<compile_context>
chip_gen: v7x
topology: tpu7x:2x2x1
jax: 0.10.0
libtpu: 0.0.40
codegen_flags: <defaults>
</compile_context>

<pallas_src>
import functools

import jax
import jax.numpy as jnp
import numpy as np
from jax.experimental import pallas as pl
from jax.experimental.pallas import tpu as pltpu


def _round_up(a, b):
    return (a + b - 1) // b * b


def _default_token_tile(n):
    """~512 is the cross-gen flops/HBM balance point (>=256 on v5e, 512-768 on
    v6e/v7x); keep >=2 token tiles when the problem allows so both v7x TCs work."""
    n128 = _round_up(max(n, 1), 128)
    if n128 <= 128:
        return 128
    return min(512, _round_up(n128 // 2, 128))


def _default_vocab_tile(v, d):
    """Large enough to amortize per-grid-step overhead, small enough that
    double-buffered bf16 weight tiles + f32 logits temporaries fit VMEM."""
    base = 1024 if d <= 2048 else 512
    return min(base, _round_up(max(v, 1), 128))


def prepare_projection_weight(weight, vocab_tile, compute_dtype=jnp.bfloat16):
    """One-time (init-style) prep of the shared embedding / projection weight:
    cast to bf16 and zero-pad the vocab dim to a vocab_tile multiple, plus the
    f32 column sum used for the hoisted smooth-loss term."""
    v, d = weight.shape
    w = weight.astype(compute_dtype)
    v_pad = _round_up(v, vocab_tile)
    if v_pad != v:
        w = jnp.pad(w, ((0, v_pad - v), (0, 0)))
    colsum = jnp.sum(w.astype(jnp.float32), axis=0)      # (d,), pad rows are zero
    return w, colsum


def _token_decoder_kernel(x_ref, w_ref, lse_ref, amax_ref,
                          m_scr, l_scr, bidx_scr,
                          *, vocab_size, vocab_tile, mask_vocab):
    j = pl.program_id(1)   # vocab-tile index ("arbitrary" reduction, innermost)

    @pl.when(j == 0)
    def _():
        m_scr[...] = jnp.full_like(m_scr, -jnp.inf)
        l_scr[...] = jnp.zeros_like(l_scr)
        bidx_scr[...] = jnp.zeros_like(bidx_scr)

    x = x_ref[...]        # (Nt, D)  bf16
    w = w_ref[...]        # (Vt, D)  bf16

    # logits = x @ w.T without materializing the transpose: contract last dims.
    logits = jax.lax.dot_general(
        x, w, dimension_numbers=(((1,), (1,)), ((), ())),
        preferred_element_type=jnp.float32)               # (Nt, Vt) f32

    nt, vt = logits.shape
    local_ids = jax.lax.broadcasted_iota(jnp.int32, (nt, vt), 1)

    if mask_vocab:
        # Padded vocab columns (zero W rows) are excluded from max/sumexp/argmax.
        # Scalar threshold: trivially all-true on every tile except the last one.
        in_vocab = local_ids < (vocab_size - j * vocab_tile)
        logits_v = jnp.where(in_vocab, logits, -jnp.inf)
    else:
        logits_v = logits

    # --- online softmax carry update ---
    tile_max = jnp.max(logits_v, axis=-1, keepdims=True)   # (Nt, 1)
    m_old = m_scr[...]
    m_new = jnp.maximum(m_old, tile_max)
    l_scr[...] = (l_scr[...] * jnp.exp(m_old - m_new)
                  + jnp.sum(jnp.exp(logits_v - m_new), axis=-1, keepdims=True))
    m_scr[...] = m_new

    # running argmax, first-maximal-index tie-break (matches jnp.argmax):
    # update only on strict improvement so earlier (lower) indices win ties.
    is_tile_max = logits_v == tile_max
    tile_arg = jnp.min(jnp.where(is_tile_max, local_ids, jnp.int32(2 ** 30)),
                       axis=-1, keepdims=True) + j * vocab_tile
    bidx_scr[...] = jnp.where(tile_max > m_old, tile_arg, bidx_scr[...])

    # --- finalize once the whole vocab has been streamed ---
    @pl.when(j == pl.num_programs(1) - 1)
    def _():
        lse_ref[...] = m_scr[...] + jnp.log(l_scr[...])
        amax_ref[...] = bidx_scr[...]


def token_decoder_forward(outs, w_padded, w_colsum, tgt_tokens_out, tgt_num_tokens, *,
                          vocab_size, label_smoothing, pad_idx,
                          token_tile=None, vocab_tile=None,
                          compute_dtype=jnp.bfloat16):
    """outs: (tgt_len, bsz, D); w_padded/w_colsum from prepare_projection_weight;
    tgt_tokens_out: (tgt_len, bsz) int32.  Returns (loss, acc)."""
    tgt_len, bsz, d = outs.shape
    v_pad, d_w = w_padded.shape
    assert d == d_w
    n = tgt_len * bsz

    if token_tile is None:
        token_tile = _default_token_tile(n)
    if vocab_tile is None:
        vocab_tile = _default_vocab_tile(vocab_size, d)
    assert v_pad % vocab_tile == 0, "weight must be prepared with the same vocab_tile"

    x = outs.reshape(n, d).astype(compute_dtype)            # (n, D) bf16
    n_pad = _round_up(n, token_tile)
    x_k = jnp.pad(x, ((0, n_pad - n), (0, 0))) if n_pad != n else x

    grid = (n_pad // token_tile, v_pad // vocab_tile)
    mask_vocab = (v_pad != vocab_size)

    kernel = functools.partial(
        _token_decoder_kernel,
        vocab_size=vocab_size, vocab_tile=vocab_tile, mask_vocab=mask_vocab)

    # Explicit scoped-VMEM budget: double-buffered bf16 streams + f32 temporaries
    # headroom for the (Nt, Vt) logits tile.  Capped at 64 MiB (v7x physical).
    vmem_est = (2 * token_tile * d * 2 + 2 * vocab_tile * d * 2
                + 4 * token_tile * vocab_tile * 4 + 16 * token_tile * 4)
    vmem_limit = int(min(64 * 2 ** 20, max(32 * 2 ** 20, 2 * vmem_est)))

    cost = pl.CostEstimate(
        flops=2 * n_pad * v_pad * d,
        transcendentals=n_pad * v_pad,
        bytes_accessed=(x_k.size * x_k.dtype.itemsize
                        + w_padded.size * w_padded.dtype.itemsize * grid[0]
                        + 2 * n_pad * 4))

    lse_tok, amax_tok = pl.pallas_call(
        kernel,
        out_shape=(jax.ShapeDtypeStruct((n_pad, 1), jnp.float32),   # per-token lse
                   jax.ShapeDtypeStruct((n_pad, 1), jnp.int32)),    # per-token argmax
        grid_spec=pltpu.PrefetchScalarGridSpec(
            num_scalar_prefetch=0,
            grid=grid,
            in_specs=[
                pl.BlockSpec((token_tile, d), lambda i, j: (i, 0)),   # x tile
                pl.BlockSpec((vocab_tile, d), lambda i, j: (j, 0)),   # weight V-tile
            ],
            out_specs=[
                pl.BlockSpec((token_tile, 1), lambda i, j: (i, 0)),
                pl.BlockSpec((token_tile, 1), lambda i, j: (i, 0)),
            ],
            scratch_shapes=[
                pltpu.VMEM((token_tile, 1), jnp.float32),   # running max m
                pltpu.VMEM((token_tile, 1), jnp.float32),   # running sumexp l
                pltpu.VMEM((token_tile, 1), jnp.int32),     # running argmax index
            ]),
        compiler_params=pltpu.CompilerParams(
            dimension_semantics=("parallel", "arbitrary"),
            vmem_limit_bytes=vmem_limit),
        cost_estimate=cost,
    )(x_k, w_padded)

    lse = lse_tok[:n, 0]           # (n,)
    top1 = amax_tok[:n, 0]         # (n,)
    tgt = tgt_tokens_out.reshape(n).astype(jnp.int32)

    # Hoisted O(N*D) pieces (negligible vs the N*V*D matmul streamed in the kernel):
    #   target logit  tval[n] = <x[n], W[tgt[n]]>
    #   logit row-sum slog[n] = <x[n], colsum(W)>
    x32 = x.astype(jnp.float32)
    w_tgt = jnp.take(w_padded, tgt, axis=0).astype(jnp.float32)   # (n, D)
    tval = jnp.sum(x32 * w_tgt, axis=-1)                          # (n,)
    slog = x32 @ w_colsum                                         # (n,)

    nll = lse - tval                       # = -lprobs[target]
    smooth = vocab_size * lse - slog       # = -sum(lprobs)

    pad_mask = tgt == pad_idx
    nll = jnp.where(pad_mask, 0.0, nll)
    smooth = jnp.where(pad_mask, 0.0, smooth)

    nll_sum = jnp.sum(nll)
    smooth_sum = jnp.sum(smooth)
    # NOTE: accuracy intentionally counts pad positions (matches the PyTorch module).
    acc = jnp.sum((top1 == tgt).astype(jnp.float32))

    eps = label_smoothing
    loss = (1.0 - eps) * nll_sum + (eps / vocab_size) * smooth_sum
    loss = loss / tgt_num_tokens
    return loss, acc


def _reference(outs, weight, tgt_tokens_out, tgt_num_tokens, label_smoothing, pad_idx):
    logits = jnp.einsum("tbd,vd->tbv", outs, weight)
    lprobs = jax.nn.log_softmax(logits, axis=-1)
    tgt = tgt_tokens_out[..., None]
    nll = -jnp.take_along_axis(lprobs, tgt, axis=-1)
    smooth = -jnp.sum(lprobs, axis=-1, keepdims=True)
    pad = tgt == pad_idx
    nll = jnp.where(pad, 0.0, nll)
    smooth = jnp.where(pad, 0.0, smooth)
    nll_s, smooth_s = jnp.sum(nll), jnp.sum(smooth)
    v = lprobs.shape[-1]
    loss = (1.0 - label_smoothing) * nll_s + label_smoothing / v * smooth_s
    loss = loss / tgt_num_tokens
    top1 = jnp.argmax(lprobs, axis=-1)
    acc = jnp.sum((top1 == tgt_tokens_out).astype(jnp.float32))
    return loss, acc


def _run_case(key, tgt_len, bsz, embed_dim, vocab, pad_idx, label_smoothing,
              token_tile, vocab_tile):
    k1, k2, k3 = jax.random.split(key, 3)
    weight = jax.random.normal(k1, (vocab, embed_dim), dtype=jnp.float32) * 0.05
    outs = jax.random.normal(k2, (tgt_len, bsz, embed_dim), dtype=jnp.float32)
    tgt_tokens_out = jax.random.randint(k3, (tgt_len, bsz), 0, vocab, dtype=jnp.int32)
    tgt_tokens_out = tgt_tokens_out.at[-1, :].set(pad_idx)   # some padding positions
    tgt_num_tokens = jnp.sum((tgt_tokens_out != pad_idx).astype(jnp.float32))

    vt = vocab_tile if vocab_tile is not None else _default_vocab_tile(vocab, embed_dim)
    w_padded, w_colsum = prepare_projection_weight(weight, vt)   # one-time prep

    loss, acc = token_decoder_forward(
        outs, w_padded, w_colsum, tgt_tokens_out, tgt_num_tokens,
        vocab_size=vocab, label_smoothing=label_smoothing, pad_idx=pad_idx,
        token_tile=token_tile, vocab_tile=vocab_tile)
    loss, acc = jax.block_until_ready((loss, acc))

    # reference on the same bf16-quantized inputs (the kernel feeds bf16 to the MXU)
    outs_ref = outs.astype(jnp.bfloat16).astype(jnp.float32)
    weight_ref = weight.astype(jnp.bfloat16).astype(jnp.float32)
    ref_loss, ref_acc = _reference(outs_ref, weight_ref, tgt_tokens_out,
                                   tgt_num_tokens, label_smoothing, pad_idx)

    np.testing.assert_allclose(np.asarray(loss), np.asarray(ref_loss),
                               rtol=1e-4, atol=1e-4)
    np.testing.assert_allclose(np.asarray(acc), np.asarray(ref_acc), rtol=0, atol=0)


if __name__ == "__main__":
    key = jax.random.PRNGKey(0)
    kA, kB = jax.random.split(key, 2)

    # Case A: explicit small tiles; 2 vocab tiles exercise the online-softmax carry,
    # vocab=200 exercises the padded-vocab mask, n=16 exercises token padding.
    _run_case(kA, tgt_len=8, bsz=2, embed_dim=32, vocab=200, pad_idx=1,
              label_smoothing=0.1, token_tile=128, vocab_tile=128)

    # Case B: auto tile selection (production path: >=2 token tiles, padded vocab).
    _run_case(kB, tgt_len=20, bsz=13, embed_dim=64, vocab=333, pad_idx=1,
              label_smoothing=0.1, token_tile=None, vocab_tile=None)

    print("KERNEL_OK")
</pallas_src>

<mosaic_0001>
module attributes {stable_mosaic.version = 11 : i64} {
  func.func @_token_decoder_kernel(%arg0: i32, %arg1: i32, %arg2: memref<128x32xbf16, #tpu.memory_space<vmem>>, %arg3: memref<128x32xbf16, #tpu.memory_space<vmem>>, %arg4: memref<128x1xf32, #tpu.memory_space<vmem>>, %arg5: memref<128x1xi32, #tpu.memory_space<vmem>>, %arg6: memref<128x1xf32, #tpu.memory_space<vmem>>, %arg7: memref<128x1xf32, #tpu.memory_space<vmem>>, %arg8: memref<128x1xi32, #tpu.memory_space<vmem>>) attributes {dimension_semantics = [#tpu.dimension_semantics<parallel>, #tpu.dimension_semantics<arbitrary>], iteration_bounds = array<i64: 1, 2>, scalar_prefetch = 0 : i64, scratch_operands = 3 : i64, tpu.core_type = #tpu.core_type<tc>, window_params = [{transform_indices = @transform_0, window_bounds = array<i64: 128, 32>}, {transform_indices = @transform_1, window_bounds = array<i64: 128, 32>}, {transform_indices = @transform_2, window_bounds = array<i64: 128, 1>}, {transform_indices = @transform_3, window_bounds = array<i64: 128, 1>}]} {
    %c0_i32 = arith.constant 0 : i32
    %0 = arith.cmpi eq, %arg1, %c0_i32 : i32
    %1 = arith.extui %0 : i1 to i32
    %c0_i32_0 = arith.constant 0 : i32
    %2 = arith.cmpi ne, %1, %c0_i32_0 : i32
    scf.if %2 {
      %cst_22 = arith.constant 0xFF800000 : f32
      %45 = vector.broadcast %cst_22 : f32 to vector<128x1xf32>
      %c0_23 = arith.constant 0 : index
      %c0_24 = arith.constant 0 : index
      %46 = vector.load %arg6[%c0_23, %c0_24] : memref<128x1xf32, #tpu.memory_space<vmem>>, vector<128x1xf32>
      tpu.vector_store %arg6[%c0_23, %c0_24], %45 {strides = array<i32>} : memref<128x1xf32, #tpu.memory_space<vmem>>, vector<128x1xf32>,
      %cst_25 = arith.constant 0.000000e+00 : f32
      %47 = vector.broadcast %cst_25 : f32 to vector<128x1xf32>
      %c0_26 = arith.constant 0 : index
      %c0_27 = arith.constant 0 : index
      %48 = vector.load %arg7[%c0_26, %c0_27] : memref<128x1xf32, #tpu.memory_space<vmem>>, vector<128x1xf32>
      tpu.vector_store %arg7[%c0_26, %c0_27], %47 {strides = array<i32>} : memref<128x1xf32, #tpu.memory_space<vmem>>, vector<128x1xf32>,
      %c0_i32_28 = arith.constant 0 : i32
      %49 = vector.broadcast %c0_i32_28 : i32 to vector<128x1xi32>
      %c0_29 = arith.constant 0 : index
      %c0_30 = arith.constant 0 : index
      %50 = vector.load %arg8[%c0_29, %c0_30] : memref<128x1xi32, #tpu.memory_space<vmem>>, vector<128x1xi32>
      tpu.vector_store %arg8[%c0_29, %c0_30], %49 {strides = array<i32>} : memref<128x1xi32, #tpu.memory_space<vmem>>, vector<128x1xi32>,
    } else {
    }
    %c0 = arith.constant 0 : index
    %c0_1 = arith.constant 0 : index
    %3 = vector.load %arg2[%c0, %c0_1] : memref<128x32xbf16, #tpu.memory_space<vmem>>, vector<128x32xbf16>
    %c0_2 = arith.constant 0 : index
    %c0_3 = arith.constant 0 : index
    %4 = vector.load %arg3[%c0_2, %c0_3] : memref<128x32xbf16, #tpu.memory_space<vmem>>, vector<128x32xbf16>
    %cst = arith.constant dense<0.000000e+00> : vector<128x128xf32>
    %5 = tpu.matmul %3, %4, %cst {dimension_numbers = #tpu.dot_dimension_numbers<[1], [1], [0], [0], [0, 0, 1, 0], [], []>} : vector<128x32xbf16>, vector<128x32xbf16>, vector<128x128xf32> -> vector<128x128xf32>
    %6 = tpu.iota {dimensions = array<i32: 1>} : vector<128x128xi32>
    %c128_i32 = arith.constant 128 : i32
    %7 = arith.muli %arg1, %c128_i32 : i32
    %c200_i32 = arith.constant 200 : i32
    %8 = arith.subi %c200_i32, %7 : i32
    %9 = vector.broadcast %8 : i32 to vector<128x128xi32>
    %10 = arith.cmpi slt, %6, %9 : vector<128x128xi32>
    %cst_4 = arith.constant 0xFF800000 : f32
    %11 = vector.broadcast %cst_4 : f32 to vector<128x128xf32>
    %12 = arith.select %10, %5, %11 : vector<128x128xi1>, vector<128x128xf32>
    %cst_5 = arith.constant dense<0xFF800000> : vector<128xf32>
    %13 = vector.multi_reduction <maximumf>, %12, %cst_5 [1] : vector<128x128xf32> to vector<128xf32>
    %14 = vector.shape_cast %13 : vector<128xf32> to vector<128x1xf32>
    %c0_6 = arith.constant 0 : index
    %c0_7 = arith.constant 0 : index
    %15 = vector.load %arg6[%c0_6, %c0_7] : memref<128x1xf32, #tpu.memory_space<vmem>>, vector<128x1xf32>
    %16 = arith.maximumf %15, %14 : vector<128x1xf32>
    %c0_8 = arith.constant 0 : index
    %c0_9 = arith.constant 0 : index
    %17 = vector.load %arg7[%c0_8, %c0_9] : memref<128x1xf32, #tpu.memory_space<vmem>>, vector<128x1xf32>
    %18 = arith.subf %15, %16 : vector<128x1xf32>
    %19 = math.exp %18 : vector<128x1xf32>
    %20 = arith.mulf %17, %19 : vector<128x1xf32>
    %21 = vector.broadcast %16 : vector<128x1xf32> to vector<128x128xf32>
    %22 = arith.subf %12, %21 : vector<128x128xf32>
    %23 = math.exp %22 : vector<128x128xf32>
    %cst_10 = arith.constant dense<0.000000e+00> : vector<128xf32>
    %24 = vector.multi_reduction <add>, %23, %cst_10 [1] : vector<128x128xf32> to vector<128xf32>
    %25 = vector.shape_cast %24 : vector<128xf32> to vector<128x1xf32>
    %26 = arith.addf %20, %25 : vector<128x1xf32>
    %c0_11 = arith.constant 0 : index
    %c0_12 = arith.constant 0 : index
    %27 = vector.load %arg7[%c0_11, %c0_12] : memref<128x1xf32, #tpu.memory_space<vmem>>, vector<128x1xf32>
    tpu.vector_store %arg7[%c0_11, %c0_12], %26 {strides = array<i32>} : memref<128x1xf32, #tpu.memory_space<vmem>>, vector<128x1xf32>,
    %c0_13 = arith.constant 0 : index
    %c0_14 = arith.constant 0 : index
    %28 = vector.load %arg6[%c0_13, %c0_14] : memref<128x1xf32, #tpu.memory_space<vmem>>, vector<128x1xf32>
    tpu.vector_store %arg6[%c0_13, %c0_14], %16 {strides = array<i32>} : memref<128x1xf32, #tpu.memory_space<vmem>>, vector<128x1xf32>,
    %29 = vector.broadcast %14 : vector<128x1xf32> to vector<128x128xf32>
    %30 = arith.cmpf oeq, %12, %29 : vector<128x128xf32>
    %c1073741824_i32 = arith.constant 1073741824 : i32
    %31 = vector.broadcast %c1073741824_i32 : i32 to vector<128x128xi32>
    %32 = arith.select %30, %6, %31 : vector<128x128xi1>, vector<128x128xi32>
    %cst_15 = arith.constant dense<2147483647> : vector<128xi32>
    %33 = vector.multi_reduction <minsi>, %32, %cst_15 [1] : vector<128x128xi32> to vector<128xi32>
    %34 = vector.shape_cast %33 : vector<128xi32> to vector<128x1xi32>
    %c128_i32_16 = arith.constant 128 : i32
    %35 = arith.muli %arg1, %c128_i32_16 : i32
    %36 = vector.broadcast %35 : i32 to vector<128x1xi32>
    %37 = arith.addi %34, %36 : vector<128x1xi32>
    %38 = arith.cmpf ogt, %14, %15 : vector<128x1xf32>
    %c0_17 = arith.constant 0 : index
    %c0_18 = arith.constant 0 : index
    %39 = vector.load %arg8[%c0_17, %c0_18] : memref<128x1xi32, #tpu.memory_space<vmem>>, vector<128x1xi32>
    %40 = arith.select %38, %37, %39 : vector<128x1xi1>, vector<128x1xi32>
    %c0_19 = arith.constant 0 : index
    %c0_20 = arith.constant 0 : index
    %41 = vector.load %arg8[%c0_19, %c0_20] : memref<128x1xi32, #tpu.memory_space<vmem>>, vector<128x1xi32>
    tpu.vector_store %arg8[%c0_19, %c0_20], %40 {strides = array<i32>} : memref<128x1xi32, #tpu.memory_space<vmem>>, vector<128x1xi32>,
    %c1_i32 = arith.constant 1 : i32
    %42 = arith.cmpi eq, %arg1, %c1_i32 : i32
    %43 = arith.extui %42 : i1 to i32
    %c0_i32_21 = arith.constant 0 : i32
    %44 = arith.cmpi ne, %43, %c0_i32_21 : i32
    scf.if %44 {
      %c0_22 = arith.constant 0 : index
      %c0_23 = arith.constant 0 : index
      %45 = vector.load %arg6[%c0_22, %c0_23] : memref<128x1xf32, #tpu.memory_space<vmem>>, vector<128x1xf32>
      %c0_24 = arith.constant 0 : index
      %c0_25 = arith.constant 0 : index
      %46 = vector.load %arg7[%c0_24, %c0_25] : memref<128x1xf32, #tpu.memory_space<vmem>>, vector<128x1xf32>
      %47 = math.log %46 : vector<128x1xf32>
      %48 = arith.addf %45, %47 : vector<128x1xf32>
      %c0_26 = arith.constant 0 : index
      %c0_27 = arith.constant 0 : index
      %49 = vector.load %arg4[%c0_26, %c0_27] : memref<128x1xf32, #tpu.memory_space<vmem>>, vector<128x1xf32>
      tpu.vector_store %arg4[%c0_26, %c0_27], %48 {strides = array<i32>} : memref<128x1xf32, #tpu.memory_space<vmem>>, vector<128x1xf32>,
      %c0_28 = arith.constant 0 : index
      %c0_29 = arith.constant 0 : index
      %50 = vector.load %arg8[%c0_28, %c0_29] : memref<128x1xi32, #tpu.memory_space<vmem>>, vector<128x1xi32>
      %c0_30 = arith.constant 0 : index
      %c0_31 = arith.constant 0 : index
      %51 = vector.load %arg5[%c0_30, %c0_31] : memref<128x1xi32, #tpu.memory_space<vmem>>, vector<128x1xi32>
      tpu.vector_store %arg5[%c0_30, %c0_31], %50 {strides = array<i32>} : memref<128x1xi32, #tpu.memory_space<vmem>>, vector<128x1xi32>,
    } else {
    }
    return
  }
  func.func @transform_0(%arg0: i32, %arg1: i32) -> (i32, i32) {
    %c0_i32 = arith.constant 0 : i32
    %c0_i32_0 = arith.constant 0 : i32
    return %arg0, %c0_i32 : i32, i32
  }
  func.func @transform_1(%arg0: i32, %arg1: i32) -> (i32, i32) {
    %c0_i32 = arith.constant 0 : i32
    %c0_i32_0 = arith.constant 0 : i32
    return %arg1, %c0_i32 : i32, i32
  }
  func.func @transform_2(%arg0: i32, %arg1: i32) -> (i32, i32) {
    %c0_i32 = arith.constant 0 : i32
    %c0_i32_0 = arith.constant 0 : i32
    return %arg0, %c0_i32 : i32, i32
  }
  func.func @transform_3(%arg0: i32, %arg1: i32) -> (i32, i32) {
    %c0_i32 = arith.constant 0 : i32
    %c0_i32_0 = arith.constant 0 : i32
    return %arg0, %c0_i32 : i32, i32
  }
}

</mosaic_0001>

<llo_original>
// kernel: tpu_custom_call.1
$region0: #{tpu_custom_call.1}
  #allocation0 [shape = 'u32[]', space=smem, size = 0x4, offset = 0x4, fixed_abs, tag = 'smem constant byte address 0x4 - core index']
  #allocation1 [shape = 'u32[144,128]{1,0:T(1,128)}', space=vmem, size = 0x12000, scoped, tag = 'internal scratch']
  #allocation2 [shape = 'f32[128,1]{1,0:T(8,128)}', space=vmem, size = 0x10000, scoped, tag = 'scratch operand']
  #allocation3 [shape = 'f32[128,1]{1,0:T(8,128)}', space=vmem, size = 0x10000, scoped, tag = 'scratch operand']
  #allocation4 [shape = 's32[128,1]{1,0:T(8,128)}', space=vmem, size = 0x10000, scoped, tag = 'scratch operand']
  %s0 = inlined_call_operand.vmem [shape: bf16[128,32], index: 0, kind: input, shape index: {}]
  %s1 = inlined_call_operand.vmem [shape: bf16[256,32], index: 1, kind: input, shape index: {}]
  %s2 = inlined_call_operand.vmem [shape: f32[128,1], index: 2, kind: output, shape index: {0}]
  %s3 = inlined_call_operand.vmem [shape: s32[128,1], index: 3, kind: output, shape index: {1}]
  %4 = xla_tuple %s2, %s3
  %s5 = sld [smem:[#allocation0]]
  $region57: #{tpu_custom_call.1} parent=0
    _
  %s7 = ssub.s32 1, %s5
  %s8 = scalar_select 0, %s7, %s5
  loop: start=0, step=1, limit=4
  $region2: #{tpu_custom_call.1} parent=0 // loop_pre_header
    _
  $region3: #{tpu_custom_call.1} parent=0 // loop_header
    %s10 = sphi 0, %s14
    %p11 = scmp.ge.s32.totalorder %s10, 4
    %s17 = sphi 0, %s29
    %s18 = sphi 0, %s25
    %s19 = sphi 0, %s17
    %s20 = sphi 0, %s18
    %s21 = sphi 0, %s19
    %s22 = sphi 0, %s20
    %s32 = sphi 0, %s34
    %s35 = sphi 0, %s32
    %s36 = sphi 0, %s35
    %s52 = sphi 0, %s36
    %s58 = sphi 0, %s60
    %s61 = sphi 0, %s58
    %s62 = sphi 0, %s61
    %s78 = sphi 0, %s62
    %s84 = sphi 0, %s86
    %s87 = sphi 0, %s84
    %s88 = sphi 0, %s87
    %s104 = sphi 0, %s88
    %s110 = sphi 0, %s112
    %s113 = sphi 0, %s110
    %s114 = sphi 0, %s113
    %s130 = sphi 0, %s114
  $region4: #{tpu_custom_call.1} parent=0 // loop_header_branch
    %13 = sbr.rel (%p11) target = $region8
  $region5: #{tpu_custom_call.1} parent=0 // loop_body
    %s15 = ssub.s32 %s10, 1
    %s16 = ssub.s32 %s10, 2
    %s23 = sadd.s32 1, %s18
    %p24 = scmp.ge.s32.totalorder %s23, 2
    %s25 = scalar_select %p24, 0, %s23
    %s26 = sadd.s32 1, %s17
    %s27 = scalar_select %p24, %s26, %s17
    %p28 = scmp.ge.s32.totalorder %s27, 1
    %s29 = scalar_select %p28, 0, %s27
    %s30 = ssub.s32 %s17, %s29
    %p31 = scmp.eq.s32.totalorder %s30, 0
    %s33 = sadd.s32 %s32, 1
    %s34 = scalar_select %p31, %s32, %s33
    %p37 = pneg %p31
    %p38 = scmp.eq.s32.totalorder %s10, 1
    %p39 = por %p37, %p38
    %p40 = scmp.ne.s32.totalorder %s32, %s35
    %p41 = scmp.eq.s32.totalorder %s10, 0
    %p42 = por %p40, %p41
    %p43 = scmp.ne.s32.totalorder %s32, %s35
    %p44 = scmp.eq.s32.totalorder %s15, 1
    %p45 = por %p43, %p44
    %p46 = scmp.ne.s32.totalorder %s35, %s36
    %p47 = scmp.eq.s32.totalorder %s15, 0
    %p48 = por %p46, %p47
    %p49 = scmp.ne.s32.totalorder %s35, %s36
    %p50 = scmp.eq.s32.totalorder %s16, 1
    %p51 = por %p49, %p50
    %p53 = scmp.ne.s32.totalorder %s36, %s52
    %p54 = scmp.eq.s32.totalorder %s16, 0
    %p55 = por %p53, %p54
    %s56 = ssub.s32 %s18, %s25
    %p57 = scmp.eq.s32.totalorder %s56, 0
    %s59 = sadd.s32 %s58, 1
    %s60 = scalar_select %p57, %s58, %s59
    %p63 = pneg %p57
    %p64 = scmp.eq.s32.totalorder %s10, 1
    %p65 = por %p63, %p64
    %p66 = scmp.ne.s32.totalorder %s58, %s61
    %p67 = scmp.eq.s32.totalorder %s10, 0
    %p68 = por %p66, %p67
    %p69 = scmp.ne.s32.totalorder %s58, %s61
    %p70 = scmp.eq.s32.totalorder %s15, 1
    %p71 = por %p69, %p70
    %p72 = scmp.ne.s32.totalorder %s61, %s62
    %p73 = scmp.eq.s32.totalorder %s15, 0
    %p74 = por %p72, %p73
    %p75 = scmp.ne.s32.totalorder %s61, %s62
    %p76 = scmp.eq.s32.totalorder %s16, 1
    %p77 = por %p75, %p76
    %p79 = scmp.ne.s32.totalorder %s62, %s78
    %p80 = scmp.eq.s32.totalorder %s16, 0
    %p81 = por %p79, %p80
    %s82 = ssub.s32 %s17, %s29
    %p83 = scmp.eq.s32.totalorder %s82, 0
    %s85 = sadd.s32 %s84, 1
    %s86 = scalar_select %p83, %s84, %s85
    %p89 = pneg %p83
    %p90 = scmp.eq.s32.totalorder %s10, 1
    %p91 = por %p89, %p90
    %p92 = scmp.ne.s32.totalorder %s84, %s87
    %p93 = scmp.eq.s32.totalorder %s10, 0
    %p94 = por %p92, %p93
    %p95 = scmp.ne.s32.totalorder %s84, %s87
    %p96 = scmp.eq.s32.totalorder %s15, 1
    %p97 = por %p95, %p96
    %p98 = scmp.ne.s32.totalorder %s87, %s88
    %p99 = scmp.eq.s32.totalorder %s15, 0
    %p100 = por %p98, %p99
    %p101 = scmp.ne.s32.totalorder %s87, %s88
    %p102 = scmp.eq.s32.totalorder %s16, 1
    %p103 = por %p101, %p102
    %p105 = scmp.ne.s32.totalorder %s88, %s104
    %p106 = scmp.eq.s32.totalorder %s16, 0
    %p107 = por %p105, %p106
    %s108 = ssub.s32 %s17, %s29
    %p109 = scmp.eq.s32.totalorder %s108, 0
    %s111 = sadd.s32 %s110, 1
    %s112 = scalar_select %p109, %s110, %s111
    %p115 = pneg %p109
    %p116 = scmp.eq.s32.totalorder %s10, 1
    %p117 = por %p115, %p116
    %p118 = scmp.ne.s32.totalorder %s110, %s113
    %p119 = scmp.eq.s32.totalorder %s10, 0
    %p120 = por %p118, %p119
    %p121 = scmp.ne.s32.totalorder %s110, %s113
    %p122 = scmp.eq.s32.totalorder %s15, 1
    %p123 = por %p121, %p122
    %p124 = scmp.ne.s32.totalorder %s113, %s114
    %p125 = scmp.eq.s32.totalorder %s15, 0
    %p126 = por %p124, %p125
    %p127 = scmp.ne.s32.totalorder %s113, %s114
    %p128 = scmp.eq.s32.totalorder %s16, 1
    %p129 = por %p127, %p128
    %p131 = scmp.ne.s32.totalorder %s114, %s130
    %p132 = scmp.eq.s32.totalorder %s16, 0
    %p133 = por %p131, %p132
    %p134 = scmp.le.s32.totalorder 1, %s10
    %p135 = scmp.lt.s32.totalorder %s10, 3
    %p136 = pnand %p134, %p135
    %p137 = pneg %p136
    // Predicated region
    $region9: #{tpu_custom_call.1} parent=5 // pred_check
      _
    $region10: #{tpu_custom_call.1} parent=5 // pred_check_branch
      %139 = sbr.rel (%p136) target = $region12
    $region11: #{tpu_custom_call.1} parent=5 // pred_region
      %s140 = ssub.s32 %s10, 1
      // Predicated region
      $region13: #{tpu_custom_call.1} parent=11 // pred_check
        %p141 = pneg %p48
      $region14: #{tpu_custom_call.1} parent=11 // pred_check_branch
        %143 = sbr.rel (%p141) target = $region16
      $region15: #{tpu_custom_call.1} parent=11 // pred_region
        %s144 = smul.u32 16, %s19
        %p145 = scmp.lt.s32.totalorder %s144, 15
        %s146 = scalar_select %p145, %s144, 15
        %s147 = smul.addr %s146, 4
        %s148 = scalar_lea.vmem %s0, %s147
        %s149 = smul.u32 16, %s19
      $region16: #{tpu_custom_call.1} parent=11 // pred_fallthru
        _
    $region12: #{tpu_custom_call.1} parent=5 // pred_fallthru
      _
    %p150 = scmp.lt.s32.totalorder %s10, 2
    // Predicated region
    $region17: #{tpu_custom_call.1} parent=5 // pred_check
      %p151 = pneg %p150
    $region18: #{tpu_custom_call.1} parent=5 // pred_check_branch
      %153 = sbr.rel (%p151) target = $region20
    $region19: #{tpu_custom_call.1} parent=5 // pred_region
      // Predicated region
      $region21: #{tpu_custom_call.1} parent=19 // pred_check
        %p154 = pneg %p68
      $region22: #{tpu_custom_call.1} parent=19 // pred_check_branch
        %156 = sbr.rel (%p154) target = $region24
      $region23: #{tpu_custom_call.1} parent=19 // pred_region
        %s157 = smul.u32 16, %s18
        %p158 = scmp.lt.s32.totalorder %s157, 31
        %s159 = scalar_select %p158, %s157, 31
        %s160 = smul.addr %s159, 4
        %s161 = scalar_lea.vmem %s1, %s160
        %s162 = smul.u32 16, %s18
      $region24: #{tpu_custom_call.1} parent=19 // pred_fallthru
        _
    $region20: #{tpu_custom_call.1} parent=5 // pred_fallthru
      _
    %p163 = scmp.le.s32.totalorder 1, %s10
    %p164 = scmp.lt.s32.totalorder %s10, 3
    %p165 = pnand %p163, %p164
    %p166 = pneg %p165
    // Predicated region
    $region25: #{tpu_custom_call.1} parent=5 // pred_check
      _
    $region26: #{tpu_custom_call.1} parent=5 // pred_check_branch
      %168 = sbr.rel (%p165) target = $region28
    $region27: #{tpu_custom_call.1} parent=5 // pred_region
      %s169 = ssub.s32 %s10, 1
      %s170 = smul.u32 16, %s19
      %p171 = scmp.lt.s32.totalorder %s170, 15
      %s172 = scalar_select %p171, %s170, 15
      %s173 = smul.addr %s172, 4
      %s174 = scalar_lea.vmem %s0, %s173
      %p175 = pneg %p48
      %p176 = pneg %p45
      %s177 = smul.u32 16, %s20
      %p178 = scmp.lt.s32.totalorder %s177, 31
      %s179 = scalar_select %p178, %s177, 31
      %s180 = smul.addr %s179, 4
      %s181 = scalar_lea.vmem %s1, %s180
      %p182 = pneg %p74
      %p183 = pneg %p71
      %p184 = pneg %p100
      %p185 = pneg %p97
      %s186 = smul.u32 16, %s19
      %p187 = scmp.lt.s32.totalorder %s186, 15
      %s188 = scalar_select %p187, %s186, 15
      %s189 = smul.addr %s188, 8
      %s190 = scalar_lea.vmem %s2, %s189
      %p191 = pneg %p126
      %p192 = pneg %p123
      %s193 = smul.u32 16, %s19
      %p194 = scmp.lt.s32.totalorder %s193, 15
      %s195 = scalar_select %p194, %s193, 15
      %s196 = smul.addr %s195, 8
      %s197 = scalar_lea.vmem %s3, %s196
      %s198 = smul.u32 16, %s19
      %p199 = scmp.lt.s32.totalorder %s198, 15
      %s200 = scalar_select %p199, %s198, 15
      %s201 = smul.addr %s200, 4
      %s202 = scalar_lea.vmem %s0, %s201
      %s203 = smul.u32 16, %s19
      %s204 = smul.u32 16, %s20
      %p205 = scmp.lt.s32.totalorder %s204, 31
      %s206 = scalar_select %p205, %s204, 31
      %s207 = smul.addr %s206, 4
      %s208 = scalar_lea.vmem %s1, %s207
      %s209 = smul.u32 16, %s20
      %s210 = smul.u32 16, %s19
      %p211 = scmp.lt.s32.totalorder %s210, 15
      %s212 = scalar_select %p211, %s210, 15
      %s213 = smul.addr %s212, 8
      %s214 = scalar_lea.vmem %s2, %s213
      %s215 = smul.u32 16, %s19
      %s216 = smul.u32 16, %s19
      %p217 = scmp.lt.s32.totalorder %s216, 15
      %s218 = scalar_select %p217, %s216, 15
      %s219 = smul.addr %s218, 8
      %s220 = scalar_lea.vmem %s3, %s219
      %s221 = smul.u32 16, %s19
      %p223 = scmp.eq.s32.totalorder %s20, 0
      // Predicated region
      $region29: #{tpu_custom_call.1} parent=27 // pred_check
        %p224 = pneg %p223
      $region30: #{tpu_custom_call.1} parent=27 // pred_check_branch
        %226 = sbr.rel (%p224) target = $region32
      $region31: #{tpu_custom_call.1} parent=27 // pred_region
        %vm227 = vcmask 7168
        %228 = vst.msk [vmem:[#allocation2] sm:$0xff] %vm227, -inf
        %229 = vst.msk [vmem:[#allocation2 + $0x8] sm:$0xff] %vm227, -inf
        %230 = vst.msk [vmem:[#allocation2 + $0x10] sm:$0xff] %vm227, -inf
        %231 = vst.msk [vmem:[#allocation2 + $0x18] sm:$0xff] %vm227, -inf
        %232 = vst.msk [vmem:[#allocation2 + $0x20] sm:$0xff] %vm227, -inf
        %233 = vst.msk [vmem:[#allocation2 + $0x28] sm:$0xff] %vm227, -inf
        %234 = vst.msk [vmem:[#allocation2 + $0x30] sm:$0xff] %vm227, -inf
        %235 = vst.msk [vmem:[#allocation2 + $0x38] sm:$0xff] %vm227, -inf
        %236 = vst.msk [vmem:[#allocation2 + $0x40] sm:$0xff] %vm227, -inf
        %237 = vst.msk [vmem:[#allocation2 + $0x48] sm:$0xff] %vm227, -inf
        %238 = vst.msk [vmem:[#allocation2 + $0x50] sm:$0xff] %vm227, -inf
        %239 = vst.msk [vmem:[#allocation2 + $0x58] sm:$0xff] %vm227, -inf
        %240 = vst.msk [vmem:[#allocation2 + $0x60] sm:$0xff] %vm227, -inf
        %241 = vst.msk [vmem:[#allocation2 + $0x68] sm:$0xff] %vm227, -inf
        %242 = vst.msk [vmem:[#allocation2 + $0x70] sm:$0xff] %vm227, -inf
        %243 = vst.msk [vmem:[#allocation2 + $0x78] sm:$0xff] %vm227, -inf
        %244 = vst.msk [vmem:[#allocation3] sm:$0xff] %vm227, 0.0
        %245 = vst.msk [vmem:[#allocation3 + $0x8] sm:$0xff] %vm227, 0.0
        %246 = vst.msk [vmem:[#allocation3 + $0x10] sm:$0xff] %vm227, 0.0
        %247 = vst.msk [vmem:[#allocation3 + $0x18] sm:$0xff] %vm227, 0.0
        %248 = vst.msk [vmem:[#allocation3 + $0x20] sm:$0xff] %vm227, 0.0
        %249 = vst.msk [vmem:[#allocation3 + $0x28] sm:$0xff] %vm227, 0.0
        %250 = vst.msk [vmem:[#allocation3 + $0x30] sm:$0xff] %vm227, 0.0
        %251 = vst.msk [vmem:[#allocation3 + $0x38] sm:$0xff] %vm227, 0.0
        %252 = vst.msk [vmem:[#allocation3 + $0x40] sm:$0xff] %vm227, 0.0
        %253 = vst.msk [vmem:[#allocation3 + $0x48] sm:$0xff] %vm227, 0.0
        %254 = vst.msk [vmem:[#allocation3 + $0x50] sm:$0xff] %vm227, 0.0
        %255 = vst.msk [vmem:[#allocation3 + $0x58] sm:$0xff] %vm227, 0.0
        %256 = vst.msk [vmem:[#allocation3 + $0x60] sm:$0xff] %vm227, 0.0
        %257 = vst.msk [vmem:[#allocation3 + $0x68] sm:$0xff] %vm227, 0.0
        %258 = vst.msk [vmem:[#allocation3 + $0x70] sm:$0xff] %vm227, 0.0
        %259 = vst.msk [vmem:[#allocation3 + $0x78] sm:$0xff] %vm227, 0.0
        %260 = vst.msk [vmem:[#allocation4] sm:$0xff] %vm227, 0
        %261 = vst.msk [vmem:[#allocation4 + $0x8] sm:$0xff] %vm227, 0
        %262 = vst.msk [vmem:[#allocation4 + $0x10] sm:$0xff] %vm227, 0
        %263 = vst.msk [vmem:[#allocation4 + $0x18] sm:$0xff] %vm227, 0
        %264 = vst.msk [vmem:[#allocation4 + $0x20] sm:$0xff] %vm227, 0
        %265 = vst.msk [vmem:[#allocation4 + $0x28] sm:$0xff] %vm227, 0
        %266 = vst.msk [vmem:[#allocation4 + $0x30] sm:$0xff] %vm227, 0
        %267 = vst.msk [vmem:[#allocation4 + $0x38] sm:$0xff] %vm227, 0
        %268 = vst.msk [vmem:[#allocation4 + $0x40] sm:$0xff] %vm227, 0
        %269 = vst.msk [vmem:[#allocation4 + $0x48] sm:$0xff] %vm227, 0
        %270 = vst.msk [vmem:[#allocation4 + $0x50] sm:$0xff] %vm227, 0
        %271 = vst.msk [vmem:[#allocation4 + $0x58] sm:$0xff] %vm227, 0
        %272 = vst.msk [vmem:[#allocation4 + $0x60] sm:$0xff] %vm227, 0
        %273 = vst.msk [vmem:[#allocation4 + $0x68] sm:$0xff] %vm227, 0
        %274 = vst.msk [vmem:[#allocation4 + $0x70] sm:$0xff] %vm227, 0
        %275 = vst.msk [vmem:[#allocation4 + $0x78] sm:$0xff] %vm227, 0
      $region32: #{tpu_custom_call.1} parent=27 // pred_fallthru
        _
      %v276 = vld [vmem:[%s202] sm:$0xf]
      %v277 = vld [vmem:[%s202 + $0x4] sm:$0xf]
      %v278 = vld [vmem:[%s202 + $0x8] sm:$0xf]
      %v279 = vld [vmem:[%s202 + $0xc] sm:$0xf]
      %v280 = vld [vmem:[%s202 + $0x10] sm:$0xf]
      %v281 = vld [vmem:[%s202 + $0x14] sm:$0xf]
      %v282 = vld [vmem:[%s202 + $0x18] sm:$0xf]
      %v283 = vld [vmem:[%s202 + $0x1c] sm:$0xf]
      %v284 = vld [vmem:[%s202 + $0x20] sm:$0xf]
      %v285 = vld [vmem:[%s202 + $0x24] sm:$0xf]
      %v286 = vld [vmem:[%s202 + $0x28] sm:$0xf]
      %v287 = vld [vmem:[%s202 + $0x2c] sm:$0xf]
      %v288 = vld [vmem:[%s202 + $0x30] sm:$0xf]
      %v289 = vld [vmem:[%s202 + $0x34] sm:$0xf]
      %v290 = vld [vmem:[%s202 + $0x38] sm:$0xf]
      %v291 = vld [vmem:[%s202 + $0x3c] sm:$0xf]
      %v292 = vld [vmem:[%s208] sm:$0xf]
      %v293 = vld [vmem:[%s208 + $0x4] sm:$0xf]
      %v294 = vld [vmem:[%s208 + $0x8] sm:$0xf]
      %v295 = vld [vmem:[%s208 + $0xc] sm:$0xf]
      %v296 = vld [vmem:[%s208 + $0x10] sm:$0xf]
      %v297 = vld [vmem:[%s208 + $0x14] sm:$0xf]
      %v298 = vld [vmem:[%s208 + $0x18] sm:$0xf]
      %v299 = vld [vmem:[%s208 + $0x1c] sm:$0xf]
      %v300 = vld [vmem:[%s208 + $0x20] sm:$0xf]
      %v301 = vld [vmem:[%s208 + $0x24] sm:$0xf]
      %v302 = vld [vmem:[%s208 + $0x28] sm:$0xf]
      %v303 = vld [vmem:[%s208 + $0x2c] sm:$0xf]
      %v304 = vld [vmem:[%s208 + $0x30] sm:$0xf]
      %v305 = vld [vmem:[%s208 + $0x34] sm:$0xf]
      %v306 = vld [vmem:[%s208 + $0x38] sm:$0xf]
      %v307 = vld [vmem:[%s208 + $0x3c] sm:$0xf]
      %v324 = vunpack.c.l.b16 %v276
      %v325 = vunpack.c.l.b16 %v277
      %v326 = vunpack.c.l.b16 %v278
      %v327 = vunpack.c.l.b16 %v279
      %v328 = vunpack.c.l.b16 %v280
      %v329 = vunpack.c.l.b16 %v281
      %v330 = vunpack.c.l.b16 %v282
      %v331 = vunpack.c.l.b16 %v283
      %v332 = vunpack.c.l.b16 %v284
      %v333 = vunpack.c.l.b16 %v285
      %v334 = vunpack.c.l.b16 %v286
      %v335 = vunpack.c.l.b16 %v287
      %v336 = vunpack.c.l.b16 %v288
      %v337 = vunpack.c.l.b16 %v289
      %v338 = vunpack.c.l.b16 %v290
      %v339 = vunpack.c.l.b16 %v291
      %v340 = vpack.c.b16 %v325, %v324
      %v341 = vpack.c.b16 %v327, %v326
      %v342 = vpack.c.b16 %v329, %v328
      %v343 = vpack.c.b16 %v331, %v330
      %v344 = vpack.c.b16 %v333, %v332
      %v345 = vpack.c.b16 %v335, %v334
      %v346 = vpack.c.b16 %v337, %v336
      %v347 = vpack.c.b16 %v339, %v338
      %v364 = vunpack.c.l.b16 %v292
      %v365 = vunpack.c.l.b16 %v293
      %v366 = vunpack.c.l.b16 %v294
      %v367 = vunpack.c.l.b16 %v295
      %v368 = vunpack.c.l.b16 %v296
      %v369 = vunpack.c.l.b16 %v297
      %v370 = vunpack.c.l.b16 %v298
      %v371 = vunpack.c.l.b16 %v299
      %v372 = vunpack.c.l.b16 %v300
      %v373 = vunpack.c.l.b16 %v301
      %v374 = vunpack.c.l.b16 %v302
      %v375 = vunpack.c.l.b16 %v303
      %v376 = vunpack.c.l.b16 %v304
      %v377 = vunpack.c.l.b16 %v305
      %v378 = vunpack.c.l.b16 %v306
      %v379 = vunpack.c.l.b16 %v307
      %v380 = vpack.c.b16 %v365, %v364
      %v381 = vpack.c.b16 %v367, %v366
      %v382 = vpack.c.b16 %v369, %v368
      %v383 = vpack.c.b16 %v371, %v370
      %v384 = vpack.c.b16 %v373, %v372
      %v385 = vpack.c.b16 %v375, %v374
      %v386 = vpack.c.b16 %v377, %v376
      %v387 = vpack.c.b16 %v379, %v378
      %vm388 = vcmask 261120
      %v390 = vsel %vm388, %v340, 0
      %v393 = vsel %vm388, %v341, 0
      %v396 = vsel %vm388, %v342, 0
      %v399 = vsel %vm388, %v343, 0
      %v402 = vsel %vm388, %v344, 0
      %v405 = vsel %vm388, %v345, 0
      %v408 = vsel %vm388, %v346, 0
      %v411 = vsel %vm388, %v347, 0
      %v414 = vsel %vm388, %v380, 0
      %v417 = vsel %vm388, %v381, 0
      %v420 = vsel %vm388, %v382, 0
      %v423 = vsel %vm388, %v383, 0
      %v426 = vsel %vm388, %v384, 0
      %v429 = vsel %vm388, %v385, 0
      %v432 = vsel %vm388, %v386, 0
      %v435 = vsel %vm388, %v387, 0
      %437 = vmatprep.subr.bf16.mxu0 0
      %438 = vmatpush1.bf16.xpose.msra.mxu0 %v414
      %439 = vmatprep.subr.bf16.mxu0 0
      %440 = vmatpush1.bf16.xpose.msra.mxu0 %v417
      %441 = vmatprep.subr.bf16.mxu0 0
      %442 = vmatpush1.bf16.xpose.msra.mxu0 %v420
      %443 = vmatprep.subr.bf16.mxu0 0
      %444 = vmatpush1.bf16.xpose.msra.mxu0 %v423
      %445 = vmatprep.subr.bf16.mxu0 0
      %446 = vmatpush1.bf16.xpose.msra.mxu0 %v426
      %447 = vmatprep.subr.bf16.mxu0 0
      %448 = vmatpush1.bf16.xpose.msra.mxu0 %v429
      %449 = vmatprep.subr.bf16.mxu0 0
      %450 = vmatpush1.bf16.xpose.msra.mxu0 %v432
      %451 = vmatprep.subr.bf16.mxu0 0
      %452 = vmatpush1.bf16.xpose.msra.mxu0 %v435
      %453 = vmatprep.subr.bf16.mxu0 0
      %454 = vmatpush1.bf16.xpose.msra.mxu0 0
      %455 = vmatprep.subr.bf16.mxu0 0
      %456 = vmatpush1.bf16.xpose.msra.mxu0 0
      %457 = vmatprep.subr.bf16.mxu0 0
      %458 = vmatpush1.bf16.xpose.msra.mxu0 0
      %459 = vmatprep.subr.bf16.mxu0 0
      %460 = vmatpush1.bf16.xpose.msra.mxu0 0
      %461 = vmatprep.subr.bf16.mxu0 0
      %462 = vmatpush1.bf16.xpose.msra.mxu0 0
      %463 = vmatprep.subr.bf16.mxu0 0
      %464 = vmatpush1.bf16.xpose.msra.mxu0 0
      %465 = vmatprep.subr.bf16.mxu0 0
      %466 = vmatpush1.bf16.xpose.msra.mxu0 0
      %467 = vmatprep.subr.bf16.mxu0 0
      %468 = vmatpush1.bf16.xpose.msra.mxu0 0
      %469 = vmatprep.mubr.bf16.mxu0 0
      %470 = vmatmul.mubr.bf16.gmra.mrb[0].mxu0 %v390
      %v471 = vpop.f32.mrb[0].mxu0
      %v472 = vadd.f32 0.0, %v471
      %v473 = vpop.f32.mrb[0].mxu0
      %v474 = vpop.f32.mrb[0].mxu0
      %v475 = vadd.f32 0.0, %v474
      %v476 = vpop.f32.mrb[0].mxu0
      %477 = vmatprep.mubr.bf16.mxu0 0
      %478 = vmatmul.mubr.bf16.gmra.mrb[0].mxu0 %v393
      %v479 = vpop.f32.mrb[0].mxu0
      %v480 = vadd.f32 0.0, %v479
      %v481 = vpop.f32.mrb[0].mxu0
      %v482 = vpop.f32.mrb[0].mxu0
      %v483 = vadd.f32 0.0, %v482
      %v484 = vpop.f32.mrb[0].mxu0
      %485 = vmatprep.mubr.bf16.mxu0 0
      %486 = vmatmul.mubr.bf16.gmra.mrb[0].mxu0 %v396
      %v487 = vpop.f32.mrb[0].mxu0
      %v488 = vadd.f32 0.0, %v487
      %v489 = vpop.f32.mrb[0].mxu0
      %v490 = vpop.f32.mrb[0].mxu0
      %v491 = vadd.f32 0.0, %v490
      %v492 = vpop.f32.mrb[0].mxu0
      %493 = vmatprep.mubr.bf16.mxu0 0
      %494 = vmatmul.mubr.bf16.gmra.mrb[0].mxu0 %v399
      %v495 = vpop.f32.mrb[0].mxu0
      %v496 = vadd.f32 0.0, %v495
      %v497 = vpop.f32.mrb[0].mxu0
      %v498 = vpop.f32.mrb[0].mxu0
      %v499 = vadd.f32 0.0, %v498
      %v500 = vpop.f32.mrb[0].mxu0
      %501 = vmatprep.mubr.bf16.mxu0 0
      %502 = vmatmul.mubr.bf16.gmra.mrb[0].mxu0 %v402
      %v503 = vpop.f32.mrb[0].mxu0
      %v504 = vadd.f32 0.0, %v503
      %v505 = vpop.f32.mrb[0].mxu0
      %v506 = vpop.f32.mrb[0].mxu0
      %v507 = vadd.f32 0.0, %v506
      %v508 = vpop.f32.mrb[0].mxu0
      %509 = vmatprep.mubr.bf16.mxu0 0
      %510 = vmatmul.mubr.bf16.gmra.mrb[0].mxu0 %v405
      %v511 = vpop.f32.mrb[0].mxu0
      %v512 = vadd.f32 0.0, %v511
      %v513 = vpop.f32.mrb[0].mxu0
      %v514 = vpop.f32.mrb[0].mxu0
      %v515 = vadd.f32 0.0, %v514
      %v516 = vpop.f32.mrb[0].mxu0
      %517 = vmatprep.mubr.bf16.mxu0 0
      %518 = vmatmul.mubr.bf16.gmra.mrb[0].mxu0 %v408
      %v519 = vpop.f32.mrb[0].mxu0
      %v520 = vadd.f32 0.0, %v519
      %v521 = vpop.f32.mrb[0].mxu0
      %v522 = vpop.f32.mrb[0].mxu0
      %v523 = vadd.f32 0.0, %v522
      %v524 = vpop.f32.mrb[0].mxu0
      %525 = vmatprep.mubr.bf16.mxu0 0
      %526 = vmatmul.mubr.bf16.gmra.mrb[0].mxu0 %v411
      %v527 = vpop.f32.mrb[0].mxu0
      %v528 = vadd.f32 0.0, %v527
      %v529 = vpop.f32.mrb[0].mxu0
      %v530 = vpop.f32.mrb[0].mxu0
      %v531 = vadd.f32 0.0, %v530
      %v532 = vpop.f32.mrb[0].mxu0
      %533 = vdwg.mxu0
      %v534 = vlaneseq
      %v535 = vand.u32 %v534, 127
      %s536 = smul.u32 %s20, 128
      %s537 = ssub.s32 200, %s536
      %v538 = vstv %s537
      %vm539 = vcmp.lt.s32.totalorder %v535, %v538
      %v540 = vsel %vm539, %v472, -inf
      %v541 = vsel %vm539, %v475, -inf
      %v542 = vsel %vm539, %v480, -inf
      %v543 = vsel %vm539, %v483, -inf
      %v544 = vsel %vm539, %v488, -inf
      %v545 = vsel %vm539, %v491, -inf
      %v546 = vsel %vm539, %v496, -inf
      %v547 = vsel %vm539, %v499, -inf
      %v548 = vsel %vm539, %v504, -inf
      %v549 = vsel %vm539, %v507, -inf
      %v550 = vsel %vm539, %v512, -inf
      %v551 = vsel %vm539, %v515, -inf
      %v552 = vsel %vm539, %v520, -inf
      %v553 = vsel %vm539, %v523, -inf
      %v554 = vsel %vm539, %v528, -inf
      %v555 = vsel %vm539, %v531, -inf
      %556 = vmax.xlane.f32.xlu0 %v540
      %v557 = vpop.xlane.xlu0 %556
      %558 = vmax.xlane.f32.xlu0 %v541
      %v559 = vpop.xlane.xlu0 %558
      %560 = vmax.xlane.f32.xlu0 %v542
      %v561 = vpop.xlane.xlu0 %560
      %562 = vmax.xlane.f32.xlu0 %v543
      %v563 = vpop.xlane.xlu0 %562
      %564 = vmax.xlane.f32.xlu0 %v544
      %v565 = vpop.xlane.xlu0 %564
      %566 = vmax.xlane.f32.xlu0 %v545
      %v567 = vpop.xlane.xlu0 %566
      %568 = vmax.xlane.f32.xlu0 %v546
      %v569 = vpop.xlane.xlu0 %568
      %570 = vmax.xlane.f32.xlu0 %v547
      %v571 = vpop.xlane.xlu0 %570
      %572 = vmax.xlane.f32.xlu0 %v548
      %v573 = vpop.xlane.xlu0 %572
      %574 = vmax.xlane.f32.xlu0 %v549
      %v575 = vpop.xlane.xlu0 %574
      %576 = vmax.xlane.f32.xlu0 %v550
      %v577 = vpop.xlane.xlu0 %576
      %578 = vmax.xlane.f32.xlu0 %v551
      %v579 = vpop.xlane.xlu0 %578
      %580 = vmax.xlane.f32.xlu0 %v552
      %v581 = vpop.xlane.xlu0 %580
      %582 = vmax.xlane.f32.xlu0 %v553
      %v583 = vpop.xlane.xlu0 %582
      %584 = vmax.xlane.f32.xlu0 %v554
      %v585 = vpop.xlane.xlu0 %584
      %586 = vmax.xlane.f32.xlu0 %v555
      %v587 = vpop.xlane.xlu0 %586
      %v588 = vld [vmem:[#allocation2] sm:$0xff]
      %v589 = vld [vmem:[#allocation2 + $0x8] sm:$0xff]
      %v590 = vld [vmem:[#allocation2 + $0x10] sm:$0xff]
      %v591 = vld [vmem:[#allocation2 + $0x18] sm:$0xff]
      %v592 = vld [vmem:[#allocation2 + $0x20] sm:$0xff]
      %v593 = vld [vmem:[#allocation2 + $0x28] sm:$0xff]
      %v594 = vld [vmem:[#allocation2 + $0x30] sm:$0xff]
      %v595 = vld [vmem:[#allocation2 + $0x38] sm:$0xff]
      %v596 = vld [vmem:[#allocation2 + $0x40] sm:$0xff]
      %v597 = vld [vmem:[#allocation2 + $0x48] sm:$0xff]
      %v598 = vld [vmem:[#allocation2 + $0x50] sm:$0xff]
      %v599 = vld [vmem:[#allocation2 + $0x58] sm:$0xff]
      %v600 = vld [vmem:[#allocation2 + $0x60] sm:$0xff]
      %v601 = vld [vmem:[#allocation2 + $0x68] sm:$0xff]
      %v602 = vld [vmem:[#allocation2 + $0x70] sm:$0xff]
      %v603 = vld [vmem:[#allocation2 + $0x78] sm:$0xff]
      %v604 = vmax.f32 %v588, %v557
      %v605 = vmax.f32 %v589, %v559
      %v606 = vmax.f32 %v590, %v561
      %v607 = vmax.f32 %v591, %v563
      %v608 = vmax.f32 %v592, %v565
      %v609 = vmax.f32 %v593, %v567
      %v610 = vmax.f32 %v594, %v569
      %v611 = vmax.f32 %v595, %v571
      %v612 = vmax.f32 %v596, %v573
      %v613 = vmax.f32 %v597, %v575
      %v614 = vmax.f32 %v598, %v577
      %v615 = vmax.f32 %v599, %v579
      %v616 = vmax.f32 %v600, %v581
      %v617 = vmax.f32 %v601, %v583
      %v618 = vmax.f32 %v602, %v585
      %v619 = vmax.f32 %v603, %v587
      %v620 = vld [vmem:[#allocation3] sm:$0xff]
      %v621 = vld [vmem:[#allocation3 + $0x8] sm:$0xff]
      %v622 = vld [vmem:[#allocation3 + $0x10] sm:$0xff]
      %v623 = vld [vmem:[#allocation3 + $0x18] sm:$0xff]
      %v624 = vld [vmem:[#allocation3 + $0x20] sm:$0xff]
      %v625 = vld [vmem:[#allocation3 + $0x28] sm:$0xff]
      %v626 = vld [vmem:[#allocation3 + $0x30] sm:$0xff]
      %v627 = vld [vmem:[#allocation3 + $0x38] sm:$0xff]
      %v628 = vld [vmem:[#allocation3 + $0x40] sm:$0xff]
      %v629 = vld [vmem:[#allocation3 + $0x48] sm:$0xff]
      %v630 = vld [vmem:[#allocation3 + $0x50] sm:$0xff]
      %v631 = vld [vmem:[#allocation3 + $0x58] sm:$0xff]
      %v632 = vld [vmem:[#allocation3 + $0x60] sm:$0xff]
      %v633 = vld [vmem:[#allocation3 + $0x68] sm:$0xff]
      %v634 = vld [vmem:[#allocation3 + $0x70] sm:$0xff]
      %v635 = vld [vmem:[#allocation3 + $0x78] sm:$0xff]
      %v636 = vsub.f32 %v588, %v604
      %v637 = vsub.f32 %v589, %v605
      %v638 = vsub.f32 %v590, %v606
      %v639 = vsub.f32 %v591, %v607
      %v640 = vsub.f32 %v592, %v608
      %v641 = vsub.f32 %v593, %v609
      %v642 = vsub.f32 %v594, %v610
      %v643 = vsub.f32 %v595, %v611
      %v644 = vsub.f32 %v596, %v612
      %v645 = vsub.f32 %v597, %v613
      %v646 = vsub.f32 %v598, %v614
      %v647 = vsub.f32 %v599, %v615
      %v648 = vsub.f32 %v600, %v616
      %v649 = vsub.f32 %v601, %v617
      %v650 = vsub.f32 %v602, %v618
      %v651 = vsub.f32 %v603, %v619
      %v652 = vmul.f32 %v636, 1.442695
      %v653 = vpow.pop %v652
      %v654 = vmul.f32 %v637, 1.442695
      %v655 = vpow.pop %v654
      %v656 = vmul.f32 %v638, 1.442695
      %v657 = vpow.pop %v656
      %v658 = vmul.f32 %v639, 1.442695
      %v659 = vpow.pop %v658
      %v660 = vmul.f32 %v640, 1.442695
      %v661 = vpow.pop %v660
      %v662 = vmul.f32 %v641, 1.442695
      %v663 = vpow.pop %v662
      %v664 = vmul.f32 %v642, 1.442695
      %v665 = vpow.pop %v664
      %v666 = vmul.f32 %v643, 1.442695
      %v667 = vpow.pop %v666
      %v668 = vmul.f32 %v644, 1.442695
      %v669 = vpow.pop %v668
      %v670 = vmul.f32 %v645, 1.442695
      %v671 = vpow.pop %v670
      %v672 = vmul.f32 %v646, 1.442695
      %v673 = vpow.pop %v672
      %v674 = vmul.f32 %v647, 1.442695
      %v675 = vpow.pop %v674
      %v676 = vmul.f32 %v648, 1.442695
      %v677 = vpow.pop %v676
      %v678 = vmul.f32 %v649, 1.442695
      %v679 = vpow.pop %v678
      %v680 = vmul.f32 %v650, 1.442695
      %v681 = vpow.pop %v680
      %v682 = vmul.f32 %v651, 1.442695
      %v683 = vpow.pop %v682
      %v684 = vmul.f32 %v620, %v653
      %v685 = vmul.f32 %v621, %v655
      %v686 = vmul.f32 %v622, %v657
      %v687 = vmul.f32 %v623, %v659
      %v688 = vmul.f32 %v624, %v661
      %v689 = vmul.f32 %v625, %v663
      %v690 = vmul.f32 %v626, %v665
      %v691 = vmul.f32 %v627, %v667
      %v692 = vmul.f32 %v628, %v669
      %v693 = vmul.f32 %v629, %v671
      %v694 = vmul.f32 %v630, %v673
      %v695 = vmul.f32 %v631, %v675
      %v696 = vmul.f32 %v632, %v677
      %v697 = vmul.f32 %v633, %v679
      %v698 = vmul.f32 %v634, %v681
      %v699 = vmul.f32 %v635, %v683
      %701 = vset.pattern.permute.xlu0 0
      %702 = vperm.xlu0 %701, %v604
      %v703 = vpop.permute.xlu0 %702
      %706 = vset.pattern.permute.xlu0 0
      %707 = vperm.xlu0 %706, %v605
      %v708 = vpop.permute.xlu0 %707
      %711 = vset.pattern.permute.xlu0 0
      %712 = vperm.xlu0 %711, %v606
      %v713 = vpop.permute.xlu0 %712
      %716 = vset.pattern.permute.xlu0 0
      %717 = vperm.xlu0 %716, %v607
      %v718 = vpop.permute.xlu0 %717
      %721 = vset.pattern.permute.xlu0 0
      %722 = vperm.xlu0 %721, %v608
      %v723 = vpop.permute.xlu0 %722
      %726 = vset.pattern.permute.xlu0 0
      %727 = vperm.xlu0 %726, %v609
      %v728 = vpop.permute.xlu0 %727
      %731 = vset.pattern.permute.xlu0 0
      %732 = vperm.xlu0 %731, %v610
      %v733 = vpop.permute.xlu0 %732
      %736 = vset.pattern.permute.xlu0 0
      %737 = vperm.xlu0 %736, %v611
      %v738 = vpop.permute.xlu0 %737
      %741 = vset.pattern.permute.xlu0 0
      %742 = vperm.xlu0 %741, %v612
      %v743 = vpop.permute.xlu0 %742
      %746 = vset.pattern.permute.xlu0 0
      %747 = vperm.xlu0 %746, %v613
      %v748 = vpop.permute.xlu0 %747
      %751 = vset.pattern.permute.xlu0 0
      %752 = vperm.xlu0 %751, %v614
      %v753 = vpop.permute.xlu0 %752
      %756 = vset.pattern.permute.xlu0 0
      %757 = vperm.xlu0 %756, %v615
      %v758 = vpop.permute.xlu0 %757
      %761 = vset.pattern.permute.xlu0 0
      %762 = vperm.xlu0 %761, %v616
      %v763 = vpop.permute.xlu0 %762
      %766 = vset.pattern.permute.xlu0 0
      %767 = vperm.xlu0 %766, %v617
      %v768 = vpop.permute.xlu0 %767
      %771 = vset.pattern.permute.xlu0 0
      %772 = vperm.xlu0 %771, %v618
      %v773 = vpop.permute.xlu0 %772
      %776 = vset.pattern.permute.xlu0 0
      %777 = vperm.xlu0 %776, %v619
      %v778 = vpop.permute.xlu0 %777
      %v780 = vsub.f32 %v540, %v703
      %v781 = vsub.f32 %v541, %v708
      %v782 = vsub.f32 %v542, %v713
      %v783 = vsub.f32 %v543, %v718
      %v784 = vsub.f32 %v544, %v723
      %v785 = vsub.f32 %v545, %v728
      %v786 = vsub.f32 %v546, %v733
      %v787 = vsub.f32 %v547, %v738
      %v788 = vsub.f32 %v548, %v743
      %v789 = vsub.f32 %v549, %v748
      %v790 = vsub.f32 %v550, %v753
      %v791 = vsub.f32 %v551, %v758
      %v792 = vsub.f32 %v552, %v763
      %v793 = vsub.f32 %v553, %v768
      %v794 = vsub.f32 %v554, %v773
      %v795 = vsub.f32 %v555, %v778
      %v796 = vmul.f32 %v780, 1.442695
      %v797 = vpow.pop %v796
      %v798 = vmul.f32 %v781, 1.442695
      %v799 = vpow.pop %v798
      %v800 = vmul.f32 %v782, 1.442695
      %v801 = vpow.pop %v800
      %v802 = vmul.f32 %v783, 1.442695
      %v803 = vpow.pop %v802
      %v804 = vmul.f32 %v784, 1.442695
      %v805 = vpow.pop %v804
      %v806 = vmul.f32 %v785, 1.442695
      %v807 = vpow.pop %v806
      %v808 = vmul.f32 %v786, 1.442695
      %v809 = vpow.pop %v808
      %v810 = vmul.f32 %v787, 1.442695
      %v811 = vpow.pop %v810
      %v812 = vmul.f32 %v788, 1.442695
      %v813 = vpow.pop %v812
      %v814 = vmul.f32 %v789, 1.442695
      %v815 = vpow.pop %v814
      %v816 = vmul.f32 %v790, 1.442695
      %v817 = vpow.pop %v816
      %v818 = vmul.f32 %v791, 1.442695
      %v819 = vpow.pop %v818
      %v820 = vmul.f32 %v792, 1.442695
      %v821 = vpow.pop %v820
      %v822 = vmul.f32 %v793, 1.442695
      %v823 = vpow.pop %v822
      %v824 = vmul.f32 %v794, 1.442695
      %v825 = vpow.pop %v824
      %v826 = vmul.f32 %v795, 1.442695
      %v827 = vpow.pop %v826
      %828 = vadd.xlane.f32.xlu0 %v797
      %v829 = vpop.xlane.xlu0 %828
      %830 = vadd.xlane.f32.xlu0 %v799
      %v831 = vpop.xlane.xlu0 %830
      %832 = vadd.xlane.f32.xlu0 %v801
      %v833 = vpop.xlane.xlu0 %832
      %834 = vadd.xlane.f32.xlu0 %v803
      %v835 = vpop.xlane.xlu0 %834
      %836 = vadd.xlane.f32.xlu0 %v805
      %v837 = vpop.xlane.xlu0 %836
      %838 = vadd.xlane.f32.xlu0 %v807
      %v839 = vpop.xlane.xlu0 %838
      %840 = vadd.xlane.f32.xlu0 %v809
      %v841 = vpop.xlane.xlu0 %840
      %842 = vadd.xlane.f32.xlu0 %v811
      %v843 = vpop.xlane.xlu0 %842
      %844 = vadd.xlane.f32.xlu0 %v813
      %v845 = vpop.xlane.xlu0 %844
      %846 = vadd.xlane.f32.xlu0 %v815
      %v847 = vpop.xlane.xlu0 %846
      %848 = vadd.xlane.f32.xlu0 %v817
      %v849 = vpop.xlane.xlu0 %848
      %850 = vadd.xlane.f32.xlu0 %v819
      %v851 = vpop.xlane.xlu0 %850
      %852 = vadd.xlane.f32.xlu0 %v821
      %v853 = vpop.xlane.xlu0 %852
      %854 = vadd.xlane.f32.xlu0 %v823
      %v855 = vpop.xlane.xlu0 %854
      %856 = vadd.xlane.f32.xlu0 %v825
      %v857 = vpop.xlane.xlu0 %856
      %858 = vadd.xlane.f32.xlu0 %v827
      %v859 = vpop.xlane.xlu0 %858
      %v860 = vadd.f32 %v684, %v829
      %v861 = vadd.f32 %v685, %v831
      %v862 = vadd.f32 %v686, %v833
      %v863 = vadd.f32 %v687, %v835
      %v864 = vadd.f32 %v688, %v837
      %v865 = vadd.f32 %v689, %v839
      %v866 = vadd.f32 %v690, %v841
      %v867 = vadd.f32 %v691, %v843
      %v868 = vadd.f32 %v692, %v845
      %v869 = vadd.f32 %v693, %v847
      %v870 = vadd.f32 %v694, %v849
      %v871 = vadd.f32 %v695, %v851
      %v872 = vadd.f32 %v696, %v853
      %v873 = vadd.f32 %v697, %v855
      %v874 = vadd.f32 %v698, %v857
      %v875 = vadd.f32 %v699, %v859
      %vm876 = vcmask 7168
      %877 = vst.msk [vmem:[#allocation3] sm:$0xff] %vm876, %v860
      %878 = vst.msk [vmem:[#allocation3 + $0x8] sm:$0xff] %vm876, %v861
      %879 = vst.msk [vmem:[#allocation3 + $0x10] sm:$0xff] %vm876, %v862
      %880 = vst.msk [vmem:[#allocation3 + $0x18] sm:$0xff] %vm876, %v863
      %881 = vst.msk [vmem:[#allocation3 + $0x20] sm:$0xff] %vm876, %v864
      %882 = vst.msk [vmem:[#allocation3 + $0x28] sm:$0xff] %vm876, %v865
      %883 = vst.msk [vmem:[#allocation3 + $0x30] sm:$0xff] %vm876, %v866
      %884 = vst.msk [vmem:[#allocation3 + $0x38] sm:$0xff] %vm876, %v867
      %885 = vst.msk [vmem:[#allocation3 + $0x40] sm:$0xff] %vm876, %v868
      %886 = vst.msk [vmem:[#allocation3 + $0x48] sm:$0xff] %vm876, %v869
      %887 = vst.msk [vmem:[#allocation3 + $0x50] sm:$0xff] %vm876, %v870
      %888 = vst.msk [vmem:[#allocation3 + $0x58] sm:$0xff] %vm876, %v871
      %889 = vst.msk [vmem:[#allocation3 + $0x60] sm:$0xff] %vm876, %v872
      %890 = vst.msk [vmem:[#allocation3 + $0x68] sm:$0xff] %vm876, %v873
      %891 = vst.msk [vmem:[#allocation3 + $0x70] sm:$0xff] %vm876, %v874
      %892 = vst.msk [vmem:[#allocation3 + $0x78] sm:$0xff] %vm876, %v875
      %893 = vst.msk [vmem:[#allocation2] sm:$0xff] %vm876, %v604
      %894 = vst.msk [vmem:[#allocation2 + $0x8] sm:$0xff] %vm876, %v605
      %895 = vst.msk [vmem:[#allocation2 + $0x10] sm:$0xff] %vm876, %v606
      %896 = vst.msk [vmem:[#allocation2 + $0x18] sm:$0xff] %vm876, %v607
      %897 = vst.msk [vmem:[#allocation2 + $0x20] sm:$0xff] %vm876, %v608
      %898 = vst.msk [vmem:[#allocation2 + $0x28] sm:$0xff] %vm876, %v609
      %899 = vst.msk [vmem:[#allocation2 + $0x30] sm:$0xff] %vm876, %v610
      %900 = vst.msk [vmem:[#allocation2 + $0x38] sm:$0xff] %vm876, %v611
      %901 = vst.msk [vmem:[#allocation2 + $0x40] sm:$0xff] %vm876, %v612
      %902 = vst.msk [vmem:[#allocation2 + $0x48] sm:$0xff] %vm876, %v613
      %903 = vst.msk [vmem:[#allocation2 + $0x50] sm:$0xff] %vm876, %v614
      %904 = vst.msk [vmem:[#allocation2 + $0x58] sm:$0xff] %vm876, %v615
      %905 = vst.msk [vmem:[#allocation2 + $0x60] sm:$0xff] %vm876, %v616
      %906 = vst.msk [vmem:[#allocation2 + $0x68] sm:$0xff] %vm876, %v617
      %907 = vst.msk [vmem:[#allocation2 + $0x70] sm:$0xff] %vm876, %v618
      %908 = vst.msk [vmem:[#allocation2 + $0x78] sm:$0xff] %vm876, %v619
      %vm909 = vcmp.eq.f32.partialorder %v540, %v557
      %vm910 = vcmp.eq.f32.partialorder %v541, %v559
      %vm911 = vcmp.eq.f32.partialorder %v542, %v561
      %vm912 = vcmp.eq.f32.partialorder %v543, %v563
      %vm913 = vcmp.eq.f32.partialorder %v544, %v565
      %vm914 = vcmp.eq.f32.partialorder %v545, %v567
      %vm915 = vcmp.eq.f32.partialorder %v546, %v569
      %vm916 = vcmp.eq.f32.partialorder %v547, %v571
      %vm917 = vcmp.eq.f32.partialorder %v548, %v573
      %vm918 = vcmp.eq.f32.partialorder %v549, %v575
      %vm919 = vcmp.eq.f32.partialorder %v550, %v577
      %vm920 = vcmp.eq.f32.partialorder %v551, %v579
      %vm921 = vcmp.eq.f32.partialorder %v552, %v581
      %vm922 = vcmp.eq.f32.partialorder %v553, %v583
      %vm923 = vcmp.eq.f32.partialorder %v554, %v585
      %vm924 = vcmp.eq.f32.partialorder %v555, %v587
      %v925 = vsel %vm909, %v535, 1073741824
      %v926 = vsel %vm910, %v535, 1073741824
      %v927 = vsel %vm911, %v535, 1073741824
      %v928 = vsel %vm912, %v535, 1073741824
      %v929 = vsel %vm913, %v535, 1073741824
      %v930 = vsel %vm914, %v535, 1073741824
      %v931 = vsel %vm915, %v535, 1073741824
      %v932 = vsel %vm916, %v535, 1073741824
      %v933 = vsel %vm917, %v535, 1073741824
      %v934 = vsel %vm918, %v535, 1073741824
      %v935 = vsel %vm919, %v535, 1073741824
      %v936 = vsel %vm920, %v535, 1073741824
      %v937 = vsel %vm921, %v535, 1073741824
      %v938 = vsel %vm922, %v535, 1073741824
      %v939 = vsel %vm923, %v535, 1073741824
      %v940 = vsel %vm924, %v535, 1073741824
      %v941 = vand.u32 %v925, 65535
      %v942 = vshra.s32 %v925, 16
      %v943 = vcvt.s32.f32 %v941
      %v944 = vcvt.s32.f32 %v942
      %945 = vmin.xlane.f32.xlu0 %v944
      %v946 = vpop.xlane.xlu0 %945
      %vm947 = vcmp.eq.f32.partialorder %v944, %v946
      %v948 = vsel %vm947, %v943, inf
      %949 = vmin.xlane.f32.xlu0 %v948
      %v950 = vpop.xlane.xlu0 %949
      %v951 = vcvt.f32.s32 %v950
      %v952 = vcvt.f32.s32 %v946
      %v953 = vshll.u32 %v952, 16
      %v954 = vadd.s32 %v953, %v951
      %v955 = vand.u32 %v926, 65535
      %v956 = vshra.s32 %v926, 16
      %v957 = vcvt.s32.f32 %v955
      %v958 = vcvt.s32.f32 %v956
      %959 = vmin.xlane.f32.xlu0 %v958
      %v960 = vpop.xlane.xlu0 %959
      %vm961 = vcmp.eq.f32.partialorder %v958, %v960
      %v962 = vsel %vm961, %v957, inf
      %963 = vmin.xlane.f32.xlu0 %v962
      %v964 = vpop.xlane.xlu0 %963
      %v965 = vcvt.f32.s32 %v964
      %v966 = vcvt.f32.s32 %v960
      %v967 = vshll.u32 %v966, 16
      %v968 = vadd.s32 %v967, %v965
      %v969 = vand.u32 %v927, 65535
      %v970 = vshra.s32 %v927, 16
      %v971 = vcvt.s32.f32 %v969
      %v972 = vcvt.s32.f32 %v970
      %973 = vmin.xlane.f32.xlu0 %v972
      %v974 = vpop.xlane.xlu0 %973
      %vm975 = vcmp.eq.f32.partialorder %v972, %v974
      %v976 = vsel %vm975, %v971, inf
      %977 = vmin.xlane.f32.xlu0 %v976
      %v978 = vpop.xlane.xlu0 %977
      %v979 = vcvt.f32.s32 %v978
      %v980 = vcvt.f32.s32 %v974
      %v981 = vshll.u32 %v980, 16
      %v982 = vadd.s32 %v981, %v979
      %v983 = vand.u32 %v928, 65535
      %v984 = vshra.s32 %v928, 16
      %v985 = vcvt.s32.f32 %v983
      %v986 = vcvt.s32.f32 %v984
      %987 = vmin.xlane.f32.xlu0 %v986
      %v988 = vpop.xlane.xlu0 %987
      %vm989 = vcmp.eq.f32.partialorder %v986, %v988
      %v990 = vsel %vm989, %v985, inf
      %991 = vmin.xlane.f32.xlu0 %v990
      %v992 = vpop.xlane.xlu0 %991
      %v993 = vcvt.f32.s32 %v992
      %v994 = vcvt.f32.s32 %v988
      %v995 = vshll.u32 %v994, 16
      %v996 = vadd.s32 %v995, %v993
      %v997 = vand.u32 %v929, 65535
      %v998 = vshra.s32 %v929, 16
      %v999 = vcvt.s32.f32 %v997
      %v1000 = vcvt.s32.f32 %v998
      %1001 = vmin.xlane.f32.xlu0 %v1000
      %v1002 = vpop.xlane.xlu0 %1001
      %vm1003 = vcmp.eq.f32.partialorder %v1000, %v1002
      %v1004 = vsel %vm1003, %v999, inf
      %1005 = vmin.xlane.f32.xlu0 %v1004
      %v1006 = vpop.xlane.xlu0 %1005
      %v1007 = vcvt.f32.s32 %v1006
      %v1008 = vcvt.f32.s32 %v1002
      %v1009 = vshll.u32 %v1008, 16
      %v1010 = vadd.s32 %v1009, %v1007
      %v1011 = vand.u32 %v930, 65535
      %v1012 = vshra.s32 %v930, 16
      %v1013 = vcvt.s32.f32 %v1011
      %v1014 = vcvt.s32.f32 %v1012
      %1015 = vmin.xlane.f32.xlu0 %v1014
      %v1016 = vpop.xlane.xlu0 %1015
      %vm1017 = vcmp.eq.f32.partialorder %v1014, %v1016
      %v1018 = vsel %vm1017, %v1013, inf
      %1019 = vmin.xlane.f32.xlu0 %v1018
      %v1020 = vpop.xlane.xlu0 %1019
      %v1021 = vcvt.f32.s32 %v1020
      %v1022 = vcvt.f32.s32 %v1016
      %v1023 = vshll.u32 %v1022, 16
      %v1024 = vadd.s32 %v1023, %v1021
      %v1025 = vand.u32 %v931, 65535
      %v1026 = vshra.s32 %v931, 16
      %v1027 = vcvt.s32.f32 %v1025
      %v1028 = vcvt.s32.f32 %v1026
      %1029 = vmin.xlane.f32.xlu0 %v1028
      %v1030 = vpop.xlane.xlu0 %1029
      %vm1031 = vcmp.eq.f32.partialorder %v1028, %v1030
      %v1032 = vsel %vm1031, %v1027, inf
      %1033 = vmin.xlane.f32.xlu0 %v1032
      %v1034 = vpop.xlane.xlu0 %1033
      %v1035 = vcvt.f32.s32 %v1034
      %v1036 = vcvt.f32.s32 %v1030
      %v1037 = vshll.u32 %v1036, 16
      %v1038 = vadd.s32 %v1037, %v1035
      %v1039 = vand.u32 %v932, 65535
      %v1040 = vshra.s32 %v932, 16
      %v1041 = vcvt.s32.f32 %v1039
      %v1042 = vcvt.s32.f32 %v1040
      %1043 = vmin.xlane.f32.xlu0 %v1042
      %v1044 = vpop.xlane.xlu0 %1043
      %vm1045 = vcmp.eq.f32.partialorder %v1042, %v1044
      %v1046 = vsel %vm1045, %v1041, inf
      %1047 = vmin.xlane.f32.xlu0 %v1046
      %v1048 = vpop.xlane.xlu0 %1047
      %v1049 = vcvt.f32.s32 %v1048
      %v1050 = vcvt.f32.s32 %v1044
      %v1051 = vshll.u32 %v1050, 16
      %v1052 = vadd.s32 %v1051, %v1049
      %v1053 = vand.u32 %v933, 65535
      %v1054 = vshra.s32 %v933, 16
      %v1055 = vcvt.s32.f32 %v1053
      %v1056 = vcvt.s32.f32 %v1054
      %1057 = vmin.xlane.f32.xlu0 %v1056
      %v1058 = vpop.xlane.xlu0 %1057
      %vm1059 = vcmp.eq.f32.partialorder %v1056, %v1058
      %v1060 = vsel %vm1059, %v1055, inf
      %1061 = vmin.xlane.f32.xlu0 %v1060
      %v1062 = vpop.xlane.xlu0 %1061
      %v1063 = vcvt.f32.s32 %v1062
      %v1064 = vcvt.f32.s32 %v1058
      %v1065 = vshll.u32 %v1064, 16
      %v1066 = vadd.s32 %v1065, %v1063
      %v1067 = vand.u32 %v934, 65535
      %v1068 = vshra.s32 %v934, 16
      %v1069 = vcvt.s32.f32 %v1067
      %v1070 = vcvt.s32.f32 %v1068
      %1071 = vmin.xlane.f32.xlu0 %v1070
      %v1072 = vpop.xlane.xlu0 %1071
      %vm1073 = vcmp.eq.f32.partialorder %v1070, %v1072
      %v1074 = vsel %vm1073, %v1069, inf
      %1075 = vmin.xlane.f32.xlu0 %v1074
      %v1076 = vpop.xlane.xlu0 %1075
      %v1077 = vcvt.f32.s32 %v1076
      %v1078 = vcvt.f32.s32 %v1072
      %v1079 = vshll.u32 %v1078, 16
      %v1080 = vadd.s32 %v1079, %v1077
      %v1081 = vand.u32 %v935, 65535
      %v1082 = vshra.s32 %v935, 16
      %v1083 = vcvt.s32.f32 %v1081
      %v1084 = vcvt.s32.f32 %v1082
      %1085 = vmin.xlane.f32.xlu0 %v1084
      %v1086 = vpop.xlane.xlu0 %1085
      %vm1087 = vcmp.eq.f32.partialorder %v1084, %v1086
      %v1088 = vsel %vm1087, %v1083, inf
      %1089 = vmin.xlane.f32.xlu0 %v1088
      %v1090 = vpop.xlane.xlu0 %1089
      %v1091 = vcvt.f32.s32 %v1090
      %v1092 = vcvt.f32.s32 %v1086
      %v1093 = vshll.u32 %v1092, 16
      %v1094 = vadd.s32 %v1093, %v1091
      %v1095 = vand.u32 %v936, 65535
      %v1096 = vshra.s32 %v936, 16
      %v1097 = vcvt.s32.f32 %v1095
      %v1098 = vcvt.s32.f32 %v1096
      %1099 = vmin.xlane.f32.xlu0 %v1098
      %v1100 = vpop.xlane.xlu0 %1099
      %vm1101 = vcmp.eq.f32.partialorder %v1098, %v1100
      %v1102 = vsel %vm1101, %v1097, inf
      %1103 = vmin.xlane.f32.xlu0 %v1102
      %v1104 = vpop.xlane.xlu0 %1103
      %v1105 = vcvt.f32.s32 %v1104
      %v1106 = vcvt.f32.s32 %v1100
      %v1107 = vshll.u32 %v1106, 16
      %v1108 = vadd.s32 %v1107, %v1105
      %v1109 = vand.u32 %v937, 65535
      %v1110 = vshra.s32 %v937, 16
      %v1111 = vcvt.s32.f32 %v1109
      %v1112 = vcvt.s32.f32 %v1110
      %1113 = vmin.xlane.f32.xlu0 %v1112
      %v1114 = vpop.xlane.xlu0 %1113
      %vm1115 = vcmp.eq.f32.partialorder %v1112, %v1114
      %v1116 = vsel %vm1115, %v1111, inf
      %1117 = vmin.xlane.f32.xlu0 %v1116
      %v1118 = vpop.xlane.xlu0 %1117
      %v1119 = vcvt.f32.s32 %v1118
      %v1120 = vcvt.f32.s32 %v1114
      %v1121 = vshll.u32 %v1120, 16
      %v1122 = vadd.s32 %v1121, %v1119
      %v1123 = vand.u32 %v938, 65535
      %v1124 = vshra.s32 %v938, 16
      %v1125 = vcvt.s32.f32 %v1123
      %v1126 = vcvt.s32.f32 %v1124
      %1127 = vmin.xlane.f32.xlu0 %v1126
      %v1128 = vpop.xlane.xlu0 %1127
      %vm1129 = vcmp.eq.f32.partialorder %v1126, %v1128
      %v1130 = vsel %vm1129, %v1125, inf
      %1131 = vmin.xlane.f32.xlu0 %v1130
      %v1132 = vpop.xlane.xlu0 %1131
      %v1133 = vcvt.f32.s32 %v1132
      %v1134 = vcvt.f32.s32 %v1128
      %v1135 = vshll.u32 %v1134, 16
      %v1136 = vadd.s32 %v1135, %v1133
      %v1137 = vand.u32 %v939, 65535
      %v1138 = vshra.s32 %v939, 16
      %v1139 = vcvt.s32.f32 %v1137
      %v1140 = vcvt.s32.f32 %v1138
      %1141 = vmin.xlane.f32.xlu0 %v1140
      %v1142 = vpop.xlane.xlu0 %1141
      %vm1143 = vcmp.eq.f32.partialorder %v1140, %v1142
      %v1144 = vsel %vm1143, %v1139, inf
      %1145 = vmin.xlane.f32.xlu0 %v1144
      %v1146 = vpop.xlane.xlu0 %1145
      %v1147 = vcvt.f32.s32 %v1146
      %v1148 = vcvt.f32.s32 %v1142
      %v1149 = vshll.u32 %v1148, 16
      %v1150 = vadd.s32 %v1149, %v1147
      %v1151 = vand.u32 %v940, 65535
      %v1152 = vshra.s32 %v940, 16
      %v1153 = vcvt.s32.f32 %v1151
      %v1154 = vcvt.s32.f32 %v1152
      %1155 = vmin.xlane.f32.xlu0 %v1154
      %v1156 = vpop.xlane.xlu0 %1155
      %vm1157 = vcmp.eq.f32.partialorder %v1154, %v1156
      %v1158 = vsel %vm1157, %v1153, inf
      %1159 = vmin.xlane.f32.xlu0 %v1158
      %v1160 = vpop.xlane.xlu0 %1159
      %v1161 = vcvt.f32.s32 %v1160
      %v1162 = vcvt.f32.s32 %v1156
      %v1163 = vshll.u32 %v1162, 16
      %v1164 = vadd.s32 %v1163, %v1161
      %v1165 = vstv %s536
      %v1166 = vadd.s32 %v954, %v1165
      %v1167 = vadd.s32 %v968, %v1165
      %v1168 = vadd.s32 %v982, %v1165
      %v1169 = vadd.s32 %v996, %v1165
      %v1170 = vadd.s32 %v1010, %v1165
      %v1171 = vadd.s32 %v1024, %v1165
      %v1172 = vadd.s32 %v1038, %v1165
      %v1173 = vadd.s32 %v1052, %v1165
      %v1174 = vadd.s32 %v1066, %v1165
      %v1175 = vadd.s32 %v1080, %v1165
      %v1176 = vadd.s32 %v1094, %v1165
      %v1177 = vadd.s32 %v1108, %v1165
      %v1178 = vadd.s32 %v1122, %v1165
      %v1179 = vadd.s32 %v1136, %v1165
      %v1180 = vadd.s32 %v1150, %v1165
      %v1181 = vadd.s32 %v1164, %v1165
      %vm1182 = vcmp.gt.f32.partialorder %v557, %v588
      %vm1183 = vcmp.gt.f32.partialorder %v559, %v589
      %vm1184 = vcmp.gt.f32.partialorder %v561, %v590
      %vm1185 = vcmp.gt.f32.partialorder %v563, %v591
      %vm1186 = vcmp.gt.f32.partialorder %v565, %v592
      %vm1187 = vcmp.gt.f32.partialorder %v567, %v593
      %vm1188 = vcmp.gt.f32.partialorder %v569, %v594
      %vm1189 = vcmp.gt.f32.partialorder %v571, %v595
      %vm1190 = vcmp.gt.f32.partialorder %v573, %v596
      %vm1191 = vcmp.gt.f32.partialorder %v575, %v597
      %vm1192 = vcmp.gt.f32.partialorder %v577, %v598
      %vm1193 = vcmp.gt.f32.partialorder %v579, %v599
      %vm1194 = vcmp.gt.f32.partialorder %v581, %v600
      %vm1195 = vcmp.gt.f32.partialorder %v583, %v601
      %vm1196 = vcmp.gt.f32.partialorder %v585, %v602
      %vm1197 = vcmp.gt.f32.partialorder %v587, %v603
      %v1198 = vld [vmem:[#allocation4] sm:$0xff]
      %v1199 = vld [vmem:[#allocation4 + $0x8] sm:$0xff]
      %v1200 = vld [vmem:[#allocation4 + $0x10] sm:$0xff]
      %v1201 = vld [vmem:[#allocation4 + $0x18] sm:$0xff]
      %v1202 = vld [vmem:[#allocation4 + $0x20] sm:$0xff]
      %v1203 = vld [vmem:[#allocation4 + $0x28] sm:$0xff]
      %v1204 = vld [vmem:[#allocation4 + $0x30] sm:$0xff]
      %v1205 = vld [vmem:[#allocation4 + $0x38] sm:$0xff]
      %v1206 = vld [vmem:[#allocation4 + $0x40] sm:$0xff]
      %v1207 = vld [vmem:[#allocation4 + $0x48] sm:$0xff]
      %v1208 = vld [vmem:[#allocation4 + $0x50] sm:$0xff]
      %v1209 = vld [vmem:[#allocation4 + $0x58] sm:$0xff]
      %v1210 = vld [vmem:[#allocation4 + $0x60] sm:$0xff]
      %v1211 = vld [vmem:[#allocation4 + $0x68] sm:$0xff]
      %v1212 = vld [vmem:[#allocation4 + $0x70] sm:$0xff]
      %v1213 = vld [vmem:[#allocation4 + $0x78] sm:$0xff]
      %v1214 = vsel %vm1182, %v1166, %v1198
      %v1215 = vsel %vm1183, %v1167, %v1199
      %v1216 = vsel %vm1184, %v1168, %v1200
      %v1217 = vsel %vm1185, %v1169, %v1201
      %v1218 = vsel %vm1186, %v1170, %v1202
      %v1219 = vsel %vm1187, %v1171, %v1203
      %v1220 = vsel %vm1188, %v1172, %v1204
      %v1221 = vsel %vm1189, %v1173, %v1205
      %v1222 = vsel %vm1190, %v1174, %v1206
      %v1223 = vsel %vm1191, %v1175, %v1207
      %v1224 = vsel %vm1192, %v1176, %v1208
      %v1225 = vsel %vm1193, %v1177, %v1209
      %v1226 = vsel %vm1194, %v1178, %v1210
      %v1227 = vsel %vm1195, %v1179, %v1211
      %v1228 = vsel %vm1196, %v1180, %v1212
      %v1229 = vsel %vm1197, %v1181, %v1213
      %1230 = vst.msk [vmem:[#allocation4] sm:$0xff] %vm876, %v1214
      %1231 = vst.msk [vmem:[#allocation4 + $0x8] sm:$0xff] %vm876, %v1215
      %1232 = vst.msk [vmem:[#allocation4 + $0x10] sm:$0xff] %vm876, %v1216
      %1233 = vst.msk [vmem:[#allocation4 + $0x18] sm:$0xff] %vm876, %v1217
      %1234 = vst.msk [vmem:[#allocation4 + $0x20] sm:$0xff] %vm876, %v1218
      %1235 = vst.msk [vmem:[#allocation4 + $0x28] sm:$0xff] %vm876, %v1219
      %1236 = vst.msk [vmem:[#allocation4 + $0x30] sm:$0xff] %vm876, %v1220
      %1237 = vst.msk [vmem:[#allocation4 + $0x38] sm:$0xff] %vm876, %v1221
      %1238 = vst.msk [vmem:[#allocation4 + $0x40] sm:$0xff] %vm876, %v1222
      %1239 = vst.msk [vmem:[#allocation4 + $0x48] sm:$0xff] %vm876, %v1223
      %1240 = vst.msk [vmem:[#allocation4 + $0x50] sm:$0xff] %vm876, %v1224
      %1241 = vst.msk [vmem:[#allocation4 + $0x58] sm:$0xff] %vm876, %v1225
      %1242 = vst.msk [vmem:[#allocation4 + $0x60] sm:$0xff] %vm876, %v1226
      %1243 = vst.msk [vmem:[#allocation4 + $0x68] sm:$0xff] %vm876, %v1227
      %1244 = vst.msk [vmem:[#allocation4 + $0x70] sm:$0xff] %vm876, %v1228
      %1245 = vst.msk [vmem:[#allocation4 + $0x78] sm:$0xff] %vm876, %v1229
      %p1246 = scmp.eq.s32.totalorder %s20, 1
      // Predicated region
      $region33: #{tpu_custom_call.1} parent=27 // pred_check
        %p1247 = pneg %p1246
      $region34: #{tpu_custom_call.1} parent=27 // pred_check_branch
        %1249 = sbr.rel (%p1247) target = $region36
      $region35: #{tpu_custom_call.1} parent=27 // pred_region
        %v1250 = vld [vmem:[#allocation2] sm:$0xff]
        %v1251 = vld [vmem:[#allocation2 + $0x8] sm:$0xff]
        %v1252 = vld [vmem:[#allocation2 + $0x10] sm:$0xff]
        %v1253 = vld [vmem:[#allocation2 + $0x18] sm:$0xff]
        %v1254 = vld [vmem:[#allocation2 + $0x20] sm:$0xff]
        %v1255 = vld [vmem:[#allocation2 + $0x28] sm:$0xff]
        %v1256 = vld [vmem:[#allocation2 + $0x30] sm:$0xff]
        %v1257 = vld [vmem:[#allocation2 + $0x38] sm:$0xff]
        %v1258 = vld [vmem:[#allocation2 + $0x40] sm:$0xff]
        %v1259 = vld [vmem:[#allocation2 + $0x48] sm:$0xff]
        %v1260 = vld [vmem:[#allocation2 + $0x50] sm:$0xff]
        %v1261 = vld [vmem:[#allocation2 + $0x58] sm:$0xff]
        %v1262 = vld [vmem:[#allocation2 + $0x60] sm:$0xff]
        %v1263 = vld [vmem:[#allocation2 + $0x68] sm:$0xff]
        %v1264 = vld [vmem:[#allocation2 + $0x70] sm:$0xff]
        %v1265 = vld [vmem:[#allocation2 + $0x78] sm:$0xff]
        %v1266 = vld [vmem:[#allocation3] sm:$0xff]
        %v1267 = vld [vmem:[#allocation3 + $0x8] sm:$0xff]
        %v1268 = vld [vmem:[#allocation3 + $0x10] sm:$0xff]
        %v1269 = vld [vmem:[#allocation3 + $0x18] sm:$0xff]
        %v1270 = vld [vmem:[#allocation3 + $0x20] sm:$0xff]
        %v1271 = vld [vmem:[#allocation3 + $0x28] sm:$0xff]
        %v1272 = vld [vmem:[#allocation3 + $0x30] sm:$0xff]
        %v1273 = vld [vmem:[#allocation3 + $0x38] sm:$0xff]
        %v1274 = vld [vmem:[#allocation3 + $0x40] sm:$0xff]
        %v1275 = vld [vmem:[#allocation3 + $0x48] sm:$0xff]
        %v1276 = vld [vmem:[#allocation3 + $0x50] sm:$0xff]
        %v1277 = vld [vmem:[#allocation3 + $0x58] sm:$0xff]
        %v1278 = vld [vmem:[#allocation3 + $0x60] sm:$0xff]
        %v1279 = vld [vmem:[#allocation3 + $0x68] sm:$0xff]
        %v1280 = vld [vmem:[#allocation3 + $0x70] sm:$0xff]
        %v1281 = vld [vmem:[#allocation3 + $0x78] sm:$0xff]
        %v1282 = vlog2.pop %v1266
        %v1283 = vmul.f32 %v1282, 0.6931472
        %v1284 = vlog2.pop %v1267
        %v1285 = vmul.f32 %v1284, 0.6931472
        %v1286 = vlog2.pop %v1268
        %v1287 = vmul.f32 %v1286, 0.6931472
        %v1288 = vlog2.pop %v1269
        %v1289 = vmul.f32 %v1288, 0.6931472
        %v1290 = vlog2.pop %v1270
        %v1291 = vmul.f32 %v1290, 0.6931472
        %v1292 = vlog2.pop %v1271
        %v1293 = vmul.f32 %v1292, 0.6931472
        %v1294 = vlog2.pop %v1272
        %v1295 = vmul.f32 %v1294, 0.6931472
        %v1296 = vlog2.pop %v1273
        %v1297 = vmul.f32 %v1296, 0.6931472
        %v1298 = vlog2.pop %v1274
        %v1299 = vmul.f32 %v1298, 0.6931472
        %v1300 = vlog2.pop %v1275
        %v1301 = vmul.f32 %v1300, 0.6931472
        %v1302 = vlog2.pop %v1276
        %v1303 = vmul.f32 %v1302, 0.6931472
        %v1304 = vlog2.pop %v1277
        %v1305 = vmul.f32 %v1304, 0.6931472
        %v1306 = vlog2.pop %v1278
        %v1307 = vmul.f32 %v1306, 0.6931472
        %v1308 = vlog2.pop %v1279
        %v1309 = vmul.f32 %v1308, 0.6931472
        %v1310 = vlog2.pop %v1280
        %v1311 = vmul.f32 %v1310, 0.6931472
        %v1312 = vlog2.pop %v1281
        %v1313 = vmul.f32 %v1312, 0.6931472
        %v1314 = vadd.f32 %v1250, %v1283
        %v1315 = vadd.f32 %v1251, %v1285
        %v1316 = vadd.f32 %v1252, %v1287
        %v1317 = vadd.f32 %v1253, %v1289
        %v1318 = vadd.f32 %v1254, %v1291
        %v1319 = vadd.f32 %v1255, %v1293
        %v1320 = vadd.f32 %v1256, %v1295
        %v1321 = vadd.f32 %v1257, %v1297
        %v1322 = vadd.f32 %v1258, %v1299
        %v1323 = vadd.f32 %v1259, %v1301
        %v1324 = vadd.f32 %v1260, %v1303
        %v1325 = vadd.f32 %v1261, %v1305
        %v1326 = vadd.f32 %v1262, %v1307
        %v1327 = vadd.f32 %v1263, %v1309
        %v1328 = vadd.f32 %v1264, %v1311
        %v1329 = vadd.f32 %v1265, %v1313
        %1330 = vst.msk [vmem:[%s214] sm:$0xff] %vm876, %v1314
        %1331 = vst.msk [vmem:[%s214 + $0x8] sm:$0xff] %vm876, %v1315
        %1332 = vst.msk [vmem:[%s214 + $0x10] sm:$0xff] %vm876, %v1316
        %1333 = vst.msk [vmem:[%s214 + $0x18] sm:$0xff] %vm876, %v1317
        %1334 = vst.msk [vmem:[%s214 + $0x20] sm:$0xff] %vm876, %v1318
        %1335 = vst.msk [vmem:[%s214 + $0x28] sm:$0xff] %vm876, %v1319
        %1336 = vst.msk [vmem:[%s214 + $0x30] sm:$0xff] %vm876, %v1320
        %1337 = vst.msk [vmem:[%s214 + $0x38] sm:$0xff] %vm876, %v1321
        %1338 = vst.msk [vmem:[%s214 + $0x40] sm:$0xff] %vm876, %v1322
        %1339 = vst.msk [vmem:[%s214 + $0x48] sm:$0xff] %vm876, %v1323
        %1340 = vst.msk [vmem:[%s214 + $0x50] sm:$0xff] %vm876, %v1324
        %1341 = vst.msk [vmem:[%s214 + $0x58] sm:$0xff] %vm876, %v1325
        %1342 = vst.msk [vmem:[%s214 + $0x60] sm:$0xff] %vm876, %v1326
        %1343 = vst.msk [vmem:[%s214 + $0x68] sm:$0xff] %vm876, %v1327
        %1344 = vst.msk [vmem:[%s214 + $0x70] sm:$0xff] %vm876, %v1328
        %1345 = vst.msk [vmem:[%s214 + $0x78] sm:$0xff] %vm876, %v1329
        %v1346 = vld [vmem:[#allocation4] sm:$0xff]
        %v1347 = vld [vmem:[#allocation4 + $0x8] sm:$0xff]
        %v1348 = vld [vmem:[#allocation4 + $0x10] sm:$0xff]
        %v1349 = vld [vmem:[#allocation4 + $0x18] sm:$0xff]
        %v1350 = vld [vmem:[#allocation4 + $0x20] sm:$0xff]
        %v1351 = vld [vmem:[#allocation4 + $0x28] sm:$0xff]
        %v1352 = vld [vmem:[#allocation4 + $0x30] sm:$0xff]
        %v1353 = vld [vmem:[#allocation4 + $0x38] sm:$0xff]
        %v1354 = vld [vmem:[#allocation4 + $0x40] sm:$0xff]
        %v1355 = vld [vmem:[#allocation4 + $0x48] sm:$0xff]
        %v1356 = vld [vmem:[#allocation4 + $0x50] sm:$0xff]
        %v1357 = vld [vmem:[#allocation4 + $0x58] sm:$0xff]
        %v1358 = vld [vmem:[#allocation4 + $0x60] sm:$0xff]
        %v1359 = vld [vmem:[#allocation4 + $0x68] sm:$0xff]
        %v1360 = vld [vmem:[#allocation4 + $0x70] sm:$0xff]
        %v1361 = vld [vmem:[#allocation4 + $0x78] sm:$0xff]
        %1362 = vst.msk [vmem:[%s220] sm:$0xff] %vm876, %v1346
        %1363 = vst.msk [vmem:[%s220 + $0x8] sm:$0xff] %vm876, %v1347
        %1364 = vst.msk [vmem:[%s220 + $0x10] sm:$0xff] %vm876, %v1348
        %1365 = vst.msk [vmem:[%s220 + $0x18] sm:$0xff] %vm876, %v1349
        %1366 = vst.msk [vmem:[%s220 + $0x20] sm:$0xff] %vm876, %v1350
        %1367 = vst.msk [vmem:[%s220 + $0x28] sm:$0xff] %vm876, %v1351
        %1368 = vst.msk [vmem:[%s220 + $0x30] sm:$0xff] %vm876, %v1352
        %1369 = vst.msk [vmem:[%s220 + $0x38] sm:$0xff] %vm876, %v1353
        %1370 = vst.msk [vmem:[%s220 + $0x40] sm:$0xff] %vm876, %v1354
        %1371 = vst.msk [vmem:[%s220 + $0x48] sm:$0xff] %vm876, %v1355
        %1372 = vst.msk [vmem:[%s220 + $0x50] sm:$0xff] %vm876, %v1356
        %1373 = vst.msk [vmem:[%s220 + $0x58] sm:$0xff] %vm876, %v1357
        %1374 = vst.msk [vmem:[%s220 + $0x60] sm:$0xff] %vm876, %v1358
        %1375 = vst.msk [vmem:[%s220 + $0x68] sm:$0xff] %vm876, %v1359
        %1376 = vst.msk [vmem:[%s220 + $0x70] sm:$0xff] %vm876, %v1360
        %1377 = vst.msk [vmem:[%s220 + $0x78] sm:$0xff] %vm876, %v1361
      $region36: #{tpu_custom_call.1} parent=27 // pred_fallthru
        _
      %s1378 = smul.u32 16, %s19
      %p1379 = scmp.lt.s32.totalorder %s1378, 15
      %s1380 = scalar_select %p1379, %s1378, 15
      %s1381 = smul.addr %s1380, 8
      %s1382 = scalar_lea.vmem %s2, %s1381
      %s1383 = smul.u32 16, %s19
      %p1384 = scmp.lt.s32.totalorder %s1383, 15
      %s1385 = scalar_select %p1384, %s1383, 15
      %s1386 = smul.addr %s1385, 8
      %s1387 = scalar_lea.vmem %s3, %s1386
      // Predicated region
      $region37: #{tpu_custom_call.1} parent=27 // pred_check
        %p1388 = pneg %p97
      $region38: #{tpu_custom_call.1} parent=27 // pred_check_branch
        %1390 = sbr.rel (%p1388) target = $region40
      $region39: #{tpu_custom_call.1} parent=27 // pred_region
        %s1391 = smul.u32 16, %s19
      $region40: #{tpu_custom_call.1} parent=27 // pred_fallthru
        _
      // Predicated region
      $region41: #{tpu_custom_call.1} parent=27 // pred_check
        %p1392 = pneg %p123
      $region42: #{tpu_custom_call.1} parent=27 // pred_check_branch
        %1394 = sbr.rel (%p1392) target = $region44
      $region43: #{tpu_custom_call.1} parent=27 // pred_region
        %s1395 = smul.u32 16, %s19
      $region44: #{tpu_custom_call.1} parent=27 // pred_fallthru
        _
      // Predicated region
      $region45: #{tpu_custom_call.1} parent=27 // pred_check
        %p1396 = pneg %p97
      $region46: #{tpu_custom_call.1} parent=27 // pred_check_branch
        %1398 = sbr.rel (%p1396) target = $region48
      $region47: #{tpu_custom_call.1} parent=27 // pred_region
        %s1399 = smul.u32 16, %s19
        %p1400 = scmp.lt.s32.totalorder %s1399, 15
        %s1401 = scalar_select %p1400, %s1399, 15
        %s1402 = smul.addr %s1401, 8
        %s1403 = scalar_lea.vmem %s2, %s1402
      $region48: #{tpu_custom_call.1} parent=27 // pred_fallthru
        _
      // Predicated region
      $region49: #{tpu_custom_call.1} parent=27 // pred_check
        %p1404 = pneg %p123
      $region50: #{tpu_custom_call.1} parent=27 // pred_check_branch
        %1406 = sbr.rel (%p1404) target = $region52
      $region51: #{tpu_custom_call.1} parent=27 // pred_region
        %s1407 = smul.u32 16, %s19
        %p1408 = scmp.lt.s32.totalorder %s1407, 15
        %s1409 = scalar_select %p1408, %s1407, 15
        %s1410 = smul.addr %s1409, 8
        %s1411 = scalar_lea.vmem %s3, %s1410
      $region52: #{tpu_custom_call.1} parent=27 // pred_fallthru
        _
    $region28: #{tpu_custom_call.1} parent=5 // pred_fallthru
      _
    %p1412 = scmp.le.s32.totalorder 2, %s10
    // Predicated region
    $region53: #{tpu_custom_call.1} parent=5 // pred_check
      %p1413 = pneg %p1412
    $region54: #{tpu_custom_call.1} parent=5 // pred_check_branch
      %1415 = sbr.rel (%p1413) target = $region56
    $region55: #{tpu_custom_call.1} parent=5 // pred_region
      %s1416 = ssub.s32 %s10, 2
    $region56: #{tpu_custom_call.1} parent=5 // pred_fallthru
      _
  $region6: #{tpu_custom_call.1} parent=0 // loop_footer
    %s14 = sadd.s32 1, %s10
  $region7: #{tpu_custom_call.1} parent=0 // loop_footer_branch
    %9 = sbr.rel target = $region3
  $region8: #{tpu_custom_call.1} parent=0 // loop_exit
    _

</llo_original>
